<compile_context>
chip_gen: v7x
topology: tpu7x:2x2x1
jax: 0.10.0
libtpu: 0.0.40
codegen_flags: <defaults>
</compile_context>

<pallas_src>
import jax
import jax.numpy as jnp
from jax.experimental import pallas as pl
from jax.experimental.pallas import tpu as pltpu


# ---------------------------------------------------------------------------
# In-kernel helpers
# ---------------------------------------------------------------------------
def _sel_even_rows(p, r):
    # (p, r) 0/1 matrix with 1.0 where col == 2*row. Left-matmul picks even rows.
    ri = jax.lax.broadcasted_iota(jnp.int32, (p, r), 0)
    ci = jax.lax.broadcasted_iota(jnp.int32, (p, r), 1)
    return jnp.where(ci == 2 * ri, 1.0, 0.0)


def _sel_even_cols(r, c):
    # (r, c) 0/1 matrix with 1.0 where row == 2*col. Right-matmul picks even cols.
    ri = jax.lax.broadcasted_iota(jnp.int32, (r, c), 0)
    ci = jax.lax.broadcasted_iota(jnp.int32, (r, c), 1)
    return jnp.where(ri == 2 * ci, 1.0, 0.0)


def _maxpool_2x2(y, oh, ow_in, n_ch):
    """2x2 / stride-2 max pool on y: (2*oh, n_ch*ow_in), columns = (channel, w).

    Because column layout is (channel, w) and ow_in == 2*ow_out, the pooled
    column index c maps to source column 2*c exactly, so both pooling axes
    reduce to a shifted-slice max followed by an even-index selection matmul.
    Returns (oh, n_ch*(ow_in//2)) with columns = (channel, w_pooled).
    """
    h_in = 2 * oh
    w_cols = n_ch * ow_in
    hm = jnp.maximum(y[0:h_in - 1, :], y[1:h_in, :])                 # (h_in-1, W)
    hp = jnp.dot(_sel_even_rows(oh, h_in - 1), hm,
                 preferred_element_type=jnp.float32)                 # (oh, W)
    wm = jnp.maximum(hp[:, 0:w_cols - 1], hp[:, 1:w_cols])           # (oh, W-1)
    return jnp.dot(wm, _sel_even_cols(w_cols - 1, n_ch * (ow_in // 2)),
                   preferred_element_type=jnp.float32)               # (oh, W/2)


# ---------------------------------------------------------------------------
# The single fused kernel: one image per grid step.
# ---------------------------------------------------------------------------
def _network_kernel(x_ref, t1_ref, b1_ref, t2_ref, b2_ref,
                    wf1_ref, bf1_ref, wf2_ref, bf2_ref, wo_ref, bo_ref,
                    o_ref):
    f32 = jnp.float32
    x = x_ref[...]                                                   # (28, 28)

    # conv1 (1->6, 5x5, valid) as 5 banded matmuls.  y1: (24, 6*24)
    y1 = jnp.zeros((24, 6 * 24), f32)
    for kh in range(5):
        y1 = y1 + jnp.dot(x[kh:kh + 24, :], t1_ref[kh],
                          preferred_element_type=f32)
    y1 = jnp.maximum(y1 + b1_ref[...], 0.0)
    p1 = _maxpool_2x2(y1, 12, 24, 6)                                 # (12, 6*12)

    # conv2 (6->12, 5x5, valid).  y2: (8, 12*8)
    y2 = jnp.zeros((8, 12 * 8), f32)
    for kh in range(5):
        y2 = y2 + jnp.dot(p1[kh:kh + 8, :], t2_ref[kh],
                          preferred_element_type=f32)
    y2 = jnp.maximum(y2 + b2_ref[...], 0.0)
    p2 = _maxpool_2x2(y2, 4, 8, 12)                                  # (4, 12*4)

    # fc1 (192->120) + ReLU: contract over the (h, c*4+w) layout; the weight
    # was pre-permuted so no in-kernel reshape/flatten is needed.
    t = bf1_ref[...]                                                 # (1, 120)
    for h in range(4):
        t = t + jnp.dot(p2[h:h + 1, :], wf1_ref[h],
                        preferred_element_type=f32)
    t = jnp.maximum(t, 0.0)
    # fc2 (120->60) + ReLU
    t = jnp.maximum(
        jnp.dot(t, wf2_ref[...], preferred_element_type=f32) + bf2_ref[...],
        0.0)
    # out (60->10)
    t = jnp.dot(t, wo_ref[...], preferred_element_type=f32) + bo_ref[...]
    o_ref[...] = t.astype(o_ref.dtype)


# ---------------------------------------------------------------------------
# One-time weight repacking (tiny; done outside the jitted forward).
# ---------------------------------------------------------------------------
def _conv_band_weights(w, in_w, out_w):
    """PyTorch conv weight (Cout, Cin, K, K) -> banded mats (K, Cin*in_w, Cout*out_w).

    T[kh, ci*in_w + wi, co*out_w + ow] = w[co, ci, kh, wi - ow] for 0 <= wi-ow < K,
    so conv_out[oh, co*out_w + ow] = sum_kh x_rows[oh+kh, :] @ T[kh].
    """
    cout, cin, k, _ = w.shape
    band = jnp.stack([jnp.eye(in_w, out_w, k=-kw, dtype=jnp.float32)
                      for kw in range(k)])                           # (K, in_w, out_w)
    t = jnp.einsum("abcd,dwe->cbwae", w.astype(jnp.float32), band)
    return t.reshape(k, cin * in_w, cout * out_w)


def prepare_params(params):
    # fc1 weight permuted to (h, c*4+w, j) so the kernel can contract the
    # pooled (4, 48) activation without any flatten/reshape.
    wf1 = params["fc1_w"].astype(jnp.float32)                        # (120, 192)
    wf1 = wf1.reshape(120, 12, 4, 4).transpose(2, 1, 3, 0).reshape(4, 48, 120)
    return {
        "t1": _conv_band_weights(params["conv1_w"], 28, 24),         # (5, 28, 144)
        "b1": jnp.repeat(params["conv1_b"].astype(jnp.float32), 24)[None, :],
        "t2": _conv_band_weights(params["conv2_w"], 12, 8),          # (5, 72, 96)
        "b2": jnp.repeat(params["conv2_b"].astype(jnp.float32), 8)[None, :],
        "w_fc1": wf1,                                                # (4, 48, 120)
        "b_fc1": params["fc1_b"].astype(jnp.float32)[None, :],       # (1, 120)
        "w_fc2": params["fc2_w"].astype(jnp.float32).T,              # (120, 60)
        "b_fc2": params["fc2_b"].astype(jnp.float32)[None, :],       # (1, 60)
        "w_out": params["out_w"].astype(jnp.float32).T,              # (60, 10)
        "b_out": params["out_b"].astype(jnp.float32)[None, :],       # (1, 10)
    }


def _full_spec(shape):
    return pl.BlockSpec(shape, lambda i, _s=shape: (0,) * len(_s))


def network_forward(prep, x_nchw):
    """x_nchw: (N, 1, 28, 28) float32 -> (N, 10) logits."""
    n = x_nchw.shape[0]
    x = x_nchw.astype(jnp.float32).reshape(n, 28, 28)   # Cin == 1

    arg_names = ["t1", "b1", "t2", "b2", "w_fc1", "b_fc1",
                 "w_fc2", "b_fc2", "w_out", "b_out"]
    weights = [prep[k] for k in arg_names]

    in_specs = [pl.BlockSpec((None, 28, 28), lambda i: (i, 0, 0))]
    in_specs += [_full_spec(w.shape) for w in weights]

    out = pl.pallas_call(
        _network_kernel,
        out_shape=jax.ShapeDtypeStruct((n, 1, 10), jnp.float32),
        grid=(n,),
        in_specs=in_specs,
        out_specs=pl.BlockSpec((None, 1, 10), lambda i: (i, 0, 0)),
        compiler_params=pltpu.CompilerParams(
            dimension_semantics=("parallel",)),
    )(x, *weights)
    return out.reshape(n, 10)


# ---------------------------------------------------------------------------
# Deterministic parameter init (PyTorch-style uniform(-1/sqrt(fan_in), +)).
# ---------------------------------------------------------------------------
def init_params(key):
    keys = jax.random.split(key, 10)

    def u(k, shape, fan_in):
        bound = 1.0 / float(fan_in) ** 0.5
        return jax.random.uniform(k, shape, jnp.float32, -bound, bound)

    return {
        "conv1_w": u(keys[0], (6, 1, 5, 5), 1 * 5 * 5),
        "conv1_b": u(keys[1], (6,), 1 * 5 * 5),
        "conv2_w": u(keys[2], (12, 6, 5, 5), 6 * 5 * 5),
        "conv2_b": u(keys[3], (12,), 6 * 5 * 5),
        "fc1_w": u(keys[4], (120, 192), 192),
        "fc1_b": u(keys[5], (120,), 192),
        "fc2_w": u(keys[6], (60, 120), 120),
        "fc2_b": u(keys[7], (60,), 120),
        "out_w": u(keys[8], (10, 60), 60),
        "out_b": u(keys[9], (10,), 60),
    }


if __name__ == "__main__":
    root = jax.random.PRNGKey(0)
    pkey, xkey = jax.random.split(root)
    params = init_params(pkey)
    prep = prepare_params(params)          # one-time weight repacking (~200 KB)
    # fc1 in_features = 12*4*4 implies a 28x28 single-channel input (MNIST).
    x = jax.random.normal(xkey, (2, 1, 28, 28), jnp.float32)

    fwd = jax.jit(network_forward)
    out = fwd(prep, x)
    jax.block_until_ready(out)
    assert out.shape == (2, 10) and out.dtype == jnp.float32
    print("KERNEL_OK")
</pallas_src>

<mosaic_0001>
module attributes {stable_mosaic.version = 11 : i64} {
  func.func @_network_kernel(%arg0: i32, %arg1: memref<1x28x28xf32, #tpu.memory_space<vmem>>, %arg2: memref<5x28x144xf32, #tpu.memory_space<vmem>>, %arg3: memref<1x144xf32, #tpu.memory_space<vmem>>, %arg4: memref<5x72x96xf32, #tpu.memory_space<vmem>>, %arg5: memref<1x96xf32, #tpu.memory_space<vmem>>, %arg6: memref<4x48x120xf32, #tpu.memory_space<vmem>>, %arg7: memref<1x120xf32, #tpu.memory_space<vmem>>, %arg8: memref<120x60xf32, #tpu.memory_space<vmem>>, %arg9: memref<1x60xf32, #tpu.memory_space<vmem>>, %arg10: memref<60x10xf32, #tpu.memory_space<vmem>>, %arg11: memref<1x10xf32, #tpu.memory_space<vmem>>, %arg12: memref<1x1x10xf32, #tpu.memory_space<vmem>>) attributes {dimension_semantics = [#tpu.dimension_semantics<parallel>], iteration_bounds = array<i64: 2>, scalar_prefetch = 0 : i64, scratch_operands = 0 : i64, tpu.core_type = #tpu.core_type<tc>, window_params = [{transform_indices = @transform_0, window_bounds = array<i64: 1, 28, 28>}, {pipeline_mode = #tpu.pipeline_mode<synchronous>, transform_indices = @transform_1, window_bounds = array<i64: 5, 28, 144>}, {pipeline_mode = #tpu.pipeline_mode<synchronous>, transform_indices = @transform_2, window_bounds = array<i64: 1, 144>}, {pipeline_mode = #tpu.pipeline_mode<synchronous>, transform_indices = @transform_3, window_bounds = array<i64: 5, 72, 96>}, {pipeline_mode = #tpu.pipeline_mode<synchronous>, transform_indices = @transform_4, window_bounds = array<i64: 1, 96>}, {pipeline_mode = #tpu.pipeline_mode<synchronous>, transform_indices = @transform_5, window_bounds = array<i64: 4, 48, 120>}, {pipeline_mode = #tpu.pipeline_mode<synchronous>, transform_indices = @transform_6, window_bounds = array<i64: 1, 120>}, {pipeline_mode = #tpu.pipeline_mode<synchronous>, transform_indices = @transform_7, window_bounds = array<i64: 120, 60>}, {pipeline_mode = #tpu.pipeline_mode<synchronous>, transform_indices = @transform_8, window_bounds = array<i64: 1, 60>}, {pipeline_mode = #tpu.pipeline_mode<synchronous>, transform_indices = @transform_9, window_bounds = array<i64: 60, 10>}, {pipeline_mode = #tpu.pipeline_mode<synchronous>, transform_indices = @transform_10, window_bounds = array<i64: 1, 10>}, {transform_indices = @transform_11, window_bounds = array<i64: 1, 1, 10>}]} {
    %c0 = arith.constant 0 : index
    %c0_0 = arith.constant 0 : index
    %c0_1 = arith.constant 0 : index
    %0 = vector.load %arg1[%c0, %c0_0, %c0_1] : memref<1x28x28xf32, #tpu.memory_space<vmem>>, vector<1x28x28xf32>
    %1 = vector.shape_cast %0 : vector<1x28x28xf32> to vector<28x28xf32>
    %cst = arith.constant 0.000000e+00 : f32
    %2 = vector.broadcast %cst : f32 to vector<24x144xf32>
    %3 = vector.extract_strided_slice %1 {offsets = [0, 0], sizes = [24, 28], strides = [1, 1]} : vector<28x28xf32> to vector<24x28xf32>
    %c0_2 = arith.constant 0 : index
    %c0_3 = arith.constant 0 : index
    %c0_4 = arith.constant 0 : index
    %4 = vector.load %arg2[%c0_2, %c0_3, %c0_4] : memref<5x28x144xf32, #tpu.memory_space<vmem>>, vector<1x28x144xf32>
    %5 = vector.shape_cast %4 : vector<1x28x144xf32> to vector<28x144xf32>
    %cst_5 = arith.constant dense<0.000000e+00> : vector<24x144xf32>
    %6 = tpu.matmul %3, %5, %cst_5 {dimension_numbers = #tpu.dot_dimension_numbers<[1], [0], [0], [1], [0, 0, 1, 1], [], []>} : vector<24x28xf32>, vector<28x144xf32>, vector<24x144xf32> -> vector<24x144xf32>
    %7 = arith.addf %2, %6 : vector<24x144xf32>
    %8 = vector.extract_strided_slice %1 {offsets = [1, 0], sizes = [24, 28], strides = [1, 1]} : vector<28x28xf32> to vector<24x28xf32>
    %c1 = arith.constant 1 : index
    %c0_6 = arith.constant 0 : index
    %c0_7 = arith.constant 0 : index
    %9 = vector.load %arg2[%c1, %c0_6, %c0_7] : memref<5x28x144xf32, #tpu.memory_space<vmem>>, vector<1x28x144xf32>
    %10 = vector.shape_cast %9 : vector<1x28x144xf32> to vector<28x144xf32>
    %cst_8 = arith.constant dense<0.000000e+00> : vector<24x144xf32>
    %11 = tpu.matmul %8, %10, %cst_8 {dimension_numbers = #tpu.dot_dimension_numbers<[1], [0], [0], [1], [0, 0, 1, 1], [], []>} : vector<24x28xf32>, vector<28x144xf32>, vector<24x144xf32> -> vector<24x144xf32>
    %12 = arith.addf %7, %11 : vector<24x144xf32>
    %13 = vector.extract_strided_slice %1 {offsets = [2, 0], sizes = [24, 28], strides = [1, 1]} : vector<28x28xf32> to vector<24x28xf32>
    %c2 = arith.constant 2 : index
    %c0_9 = arith.constant 0 : index
    %c0_10 = arith.constant 0 : index
    %14 = vector.load %arg2[%c2, %c0_9, %c0_10] : memref<5x28x144xf32, #tpu.memory_space<vmem>>, vector<1x28x144xf32>
    %15 = vector.shape_cast %14 : vector<1x28x144xf32> to vector<28x144xf32>
    %cst_11 = arith.constant dense<0.000000e+00> : vector<24x144xf32>
    %16 = tpu.matmul %13, %15, %cst_11 {dimension_numbers = #tpu.dot_dimension_numbers<[1], [0], [0], [1], [0, 0, 1, 1], [], []>} : vector<24x28xf32>, vector<28x144xf32>, vector<24x144xf32> -> vector<24x144xf32>
    %17 = arith.addf %12, %16 : vector<24x144xf32>
    %18 = vector.extract_strided_slice %1 {offsets = [3, 0], sizes = [24, 28], strides = [1, 1]} : vector<28x28xf32> to vector<24x28xf32>
    %c3 = arith.constant 3 : index
    %c0_12 = arith.constant 0 : index
    %c0_13 = arith.constant 0 : index
    %19 = vector.load %arg2[%c3, %c0_12, %c0_13] : memref<5x28x144xf32, #tpu.memory_space<vmem>>, vector<1x28x144xf32>
    %20 = vector.shape_cast %19 : vector<1x28x144xf32> to vector<28x144xf32>
    %cst_14 = arith.constant dense<0.000000e+00> : vector<24x144xf32>
    %21 = tpu.matmul %18, %20, %cst_14 {dimension_numbers = #tpu.dot_dimension_numbers<[1], [0], [0], [1], [0, 0, 1, 1], [], []>} : vector<24x28xf32>, vector<28x144xf32>, vector<24x144xf32> -> vector<24x144xf32>
    %22 = arith.addf %17, %21 : vector<24x144xf32>
    %23 = vector.extract_strided_slice %1 {offsets = [4, 0], sizes = [24, 28], strides = [1, 1]} : vector<28x28xf32> to vector<24x28xf32>
    %c4 = arith.constant 4 : index
    %c0_15 = arith.constant 0 : index
    %c0_16 = arith.constant 0 : index
    %24 = vector.load %arg2[%c4, %c0_15, %c0_16] : memref<5x28x144xf32, #tpu.memory_space<vmem>>, vector<1x28x144xf32>
    %25 = vector.shape_cast %24 : vector<1x28x144xf32> to vector<28x144xf32>
    %cst_17 = arith.constant dense<0.000000e+00> : vector<24x144xf32>
    %26 = tpu.matmul %23, %25, %cst_17 {dimension_numbers = #tpu.dot_dimension_numbers<[1], [0], [0], [1], [0, 0, 1, 1], [], []>} : vector<24x28xf32>, vector<28x144xf32>, vector<24x144xf32> -> vector<24x144xf32>
    %27 = arith.addf %22, %26 : vector<24x144xf32>
    %c0_18 = arith.constant 0 : index
    %c0_19 = arith.constant 0 : index
    %28 = vector.load %arg3[%c0_18, %c0_19] : memref<1x144xf32, #tpu.memory_space<vmem>>, vector<1x144xf32>
    %29 = vector.broadcast %28 : vector<1x144xf32> to vector<24x144xf32>
    %30 = arith.addf %27, %29 : vector<24x144xf32>
    %cst_20 = arith.constant 0.000000e+00 : f32
    %31 = vector.broadcast %cst_20 : f32 to vector<24x144xf32>
    %32 = arith.maximumf %30, %31 : vector<24x144xf32>
    %33 = vector.extract_strided_slice %32 {offsets = [0, 0], sizes = [23, 144], strides = [1, 1]} : vector<24x144xf32> to vector<23x144xf32>
    %34 = vector.extract_strided_slice %32 {offsets = [1, 0], sizes = [23, 144], strides = [1, 1]} : vector<24x144xf32> to vector<23x144xf32>
    %35 = arith.maximumf %33, %34 : vector<23x144xf32>
    %36 = tpu.iota {dimensions = array<i32: 0>} : vector<12x23xi32>
    %37 = tpu.iota {dimensions = array<i32: 1>} : vector<12x23xi32>
    %c2_i32 = arith.constant 2 : i32
    %38 = vector.broadcast %c2_i32 : i32 to vector<12x23xi32>
    %39 = arith.muli %38, %36 : vector<12x23xi32>
    %40 = arith.cmpi eq, %37, %39 : vector<12x23xi32>
    %cst_21 = arith.constant 1.000000e+00 : f32
    %cst_22 = arith.constant 0.000000e+00 : f32
    %41 = vector.broadcast %cst_21 : f32 to vector<12x23xf32>
    %42 = vector.broadcast %cst_22 : f32 to vector<12x23xf32>
    %43 = arith.select %40, %41, %42 : vector<12x23xi1>, vector<12x23xf32>
    %cst_23 = arith.constant dense<0.000000e+00> : vector<12x144xf32>
    %44 = tpu.matmul %43, %35, %cst_23 {dimension_numbers = #tpu.dot_dimension_numbers<[1], [0], [0], [1], [0, 0, 1, 1], [], []>} : vector<12x23xf32>, vector<23x144xf32>, vector<12x144xf32> -> vector<12x144xf32>
    %45 = vector.extract_strided_slice %44 {offsets = [0, 0], sizes = [12, 143], strides = [1, 1]} : vector<12x144xf32> to vector<12x143xf32>
    %46 = vector.extract_strided_slice %44 {offsets = [0, 1], sizes = [12, 143], strides = [1, 1]} : vector<12x144xf32> to vector<12x143xf32>
    %47 = arith.maximumf %45, %46 : vector<12x143xf32>
    %48 = tpu.iota {dimensions = array<i32: 0>} : vector<143x72xi32>
    %49 = tpu.iota {dimensions = array<i32: 1>} : vector<143x72xi32>
    %c2_i32_24 = arith.constant 2 : i32
    %50 = vector.broadcast %c2_i32_24 : i32 to vector<143x72xi32>
    %51 = arith.muli %50, %49 : vector<143x72xi32>
    %52 = arith.cmpi eq, %48, %51 : vector<143x72xi32>
    %cst_25 = arith.constant 1.000000e+00 : f32
    %cst_26 = arith.constant 0.000000e+00 : f32
    %53 = vector.broadcast %cst_25 : f32 to vector<143x72xf32>
    %54 = vector.broadcast %cst_26 : f32 to vector<143x72xf32>
    %55 = arith.select %52, %53, %54 : vector<143x72xi1>, vector<143x72xf32>
    %cst_27 = arith.constant dense<0.000000e+00> : vector<12x72xf32>
    %56 = tpu.matmul %47, %55, %cst_27 {dimension_numbers = #tpu.dot_dimension_numbers<[1], [0], [0], [1], [0, 0, 1, 1], [], []>} : vector<12x143xf32>, vector<143x72xf32>, vector<12x72xf32> -> vector<12x72xf32>
    %cst_28 = arith.constant 0.000000e+00 : f32
    %57 = vector.broadcast %cst_28 : f32 to vector<8x96xf32>
    %58 = vector.extract_strided_slice %56 {offsets = [0, 0], sizes = [8, 72], strides = [1, 1]} : vector<12x72xf32> to vector<8x72xf32>
    %c0_29 = arith.constant 0 : index
    %c0_30 = arith.constant 0 : index
    %c0_31 = arith.constant 0 : index
    %59 = vector.load %arg4[%c0_29, %c0_30, %c0_31] : memref<5x72x96xf32, #tpu.memory_space<vmem>>, vector<1x72x96xf32>
    %60 = vector.shape_cast %59 : vector<1x72x96xf32> to vector<72x96xf32>
    %cst_32 = arith.constant dense<0.000000e+00> : vector<8x96xf32>
    %61 = tpu.matmul %58, %60, %cst_32 {dimension_numbers = #tpu.dot_dimension_numbers<[1], [0], [0], [1], [0, 0, 1, 1], [], []>} : vector<8x72xf32>, vector<72x96xf32>, vector<8x96xf32> -> vector<8x96xf32>
    %62 = arith.addf %57, %61 : vector<8x96xf32>
    %63 = vector.extract_strided_slice %56 {offsets = [1, 0], sizes = [8, 72], strides = [1, 1]} : vector<12x72xf32> to vector<8x72xf32>
    %c1_33 = arith.constant 1 : index
    %c0_34 = arith.constant 0 : index
    %c0_35 = arith.constant 0 : index
    %64 = vector.load %arg4[%c1_33, %c0_34, %c0_35] : memref<5x72x96xf32, #tpu.memory_space<vmem>>, vector<1x72x96xf32>
    %65 = vector.shape_cast %64 : vector<1x72x96xf32> to vector<72x96xf32>
    %cst_36 = arith.constant dense<0.000000e+00> : vector<8x96xf32>
    %66 = tpu.matmul %63, %65, %cst_36 {dimension_numbers = #tpu.dot_dimension_numbers<[1], [0], [0], [1], [0, 0, 1, 1], [], []>} : vector<8x72xf32>, vector<72x96xf32>, vector<8x96xf32> -> vector<8x96xf32>
    %67 = arith.addf %62, %66 : vector<8x96xf32>
    %68 = vector.extract_strided_slice %56 {offsets = [2, 0], sizes = [8, 72], strides = [1, 1]} : vector<12x72xf32> to vector<8x72xf32>
    %c2_37 = arith.constant 2 : index
    %c0_38 = arith.constant 0 : index
    %c0_39 = arith.constant 0 : index
    %69 = vector.load %arg4[%c2_37, %c0_38, %c0_39] : memref<5x72x96xf32, #tpu.memory_space<vmem>>, vector<1x72x96xf32>
    %70 = vector.shape_cast %69 : vector<1x72x96xf32> to vector<72x96xf32>
    %cst_40 = arith.constant dense<0.000000e+00> : vector<8x96xf32>
    %71 = tpu.matmul %68, %70, %cst_40 {dimension_numbers = #tpu.dot_dimension_numbers<[1], [0], [0], [1], [0, 0, 1, 1], [], []>} : vector<8x72xf32>, vector<72x96xf32>, vector<8x96xf32> -> vector<8x96xf32>
    %72 = arith.addf %67, %71 : vector<8x96xf32>
    %73 = vector.extract_strided_slice %56 {offsets = [3, 0], sizes = [8, 72], strides = [1, 1]} : vector<12x72xf32> to vector<8x72xf32>
    %c3_41 = arith.constant 3 : index
    %c0_42 = arith.constant 0 : index
    %c0_43 = arith.constant 0 : index
    %74 = vector.load %arg4[%c3_41, %c0_42, %c0_43] : memref<5x72x96xf32, #tpu.memory_space<vmem>>, vector<1x72x96xf32>
    %75 = vector.shape_cast %74 : vector<1x72x96xf32> to vector<72x96xf32>
    %cst_44 = arith.constant dense<0.000000e+00> : vector<8x96xf32>
    %76 = tpu.matmul %73, %75, %cst_44 {dimension_numbers = #tpu.dot_dimension_numbers<[1], [0], [0], [1], [0, 0, 1, 1], [], []>} : vector<8x72xf32>, vector<72x96xf32>, vector<8x96xf32> -> vector<8x96xf32>
    %77 = arith.addf %72, %76 : vector<8x96xf32>
    %78 = vector.extract_strided_slice %56 {offsets = [4, 0], sizes = [8, 72], strides = [1, 1]} : vector<12x72xf32> to vector<8x72xf32>
    %c4_45 = arith.constant 4 : index
    %c0_46 = arith.constant 0 : index
    %c0_47 = arith.constant 0 : index
    %79 = vector.load %arg4[%c4_45, %c0_46, %c0_47] : memref<5x72x96xf32, #tpu.memory_space<vmem>>, vector<1x72x96xf32>
    %80 = vector.shape_cast %79 : vector<1x72x96xf32> to vector<72x96xf32>
    %cst_48 = arith.constant dense<0.000000e+00> : vector<8x96xf32>
    %81 = tpu.matmul %78, %80, %cst_48 {dimension_numbers = #tpu.dot_dimension_numbers<[1], [0], [0], [1], [0, 0, 1, 1], [], []>} : vector<8x72xf32>, vector<72x96xf32>, vector<8x96xf32> -> vector<8x96xf32>
    %82 = arith.addf %77, %81 : vector<8x96xf32>
    %c0_49 = arith.constant 0 : index
    %c0_50 = arith.constant 0 : index
    %83 = vector.load %arg5[%c0_49, %c0_50] : memref<1x96xf32, #tpu.memory_space<vmem>>, vector<1x96xf32>
    %84 = vector.broadcast %83 : vector<1x96xf32> to vector<8x96xf32>
    %85 = arith.addf %82, %84 : vector<8x96xf32>
    %cst_51 = arith.constant 0.000000e+00 : f32
    %86 = vector.broadcast %cst_51 : f32 to vector<8x96xf32>
    %87 = arith.maximumf %85, %86 : vector<8x96xf32>
    %88 = vector.extract_strided_slice %87 {offsets = [0, 0], sizes = [7, 96], strides = [1, 1]} : vector<8x96xf32> to vector<7x96xf32>
    %89 = vector.extract_strided_slice %87 {offsets = [1, 0], sizes = [7, 96], strides = [1, 1]} : vector<8x96xf32> to vector<7x96xf32>
    %90 = arith.maximumf %88, %89 : vector<7x96xf32>
    %91 = tpu.iota {dimensions = array<i32: 0>} : vector<4x7xi32>
    %92 = tpu.iota {dimensions = array<i32: 1>} : vector<4x7xi32>
    %c2_i32_52 = arith.constant 2 : i32
    %93 = vector.broadcast %c2_i32_52 : i32 to vector<4x7xi32>
    %94 = arith.muli %93, %91 : vector<4x7xi32>
    %95 = arith.cmpi eq, %92, %94 : vector<4x7xi32>
    %cst_53 = arith.constant 1.000000e+00 : f32
    %cst_54 = arith.constant 0.000000e+00 : f32
    %96 = vector.broadcast %cst_53 : f32 to vector<4x7xf32>
    %97 = vector.broadcast %cst_54 : f32 to vector<4x7xf32>
    %98 = arith.select %95, %96, %97 : vector<4x7xi1>, vector<4x7xf32>
    %cst_55 = arith.constant dense<0.000000e+00> : vector<4x96xf32>
    %99 = tpu.matmul %98, %90, %cst_55 {dimension_numbers = #tpu.dot_dimension_numbers<[1], [0], [0], [1], [0, 0, 1, 1], [], []>} : vector<4x7xf32>, vector<7x96xf32>, vector<4x96xf32> -> vector<4x96xf32>
    %100 = vector.extract_strided_slice %99 {offsets = [0, 0], sizes = [4, 95], strides = [1, 1]} : vector<4x96xf32> to vector<4x95xf32>
    %101 = vector.extract_strided_slice %99 {offsets = [0, 1], sizes = [4, 95], strides = [1, 1]} : vector<4x96xf32> to vector<4x95xf32>
    %102 = arith.maximumf %100, %101 : vector<4x95xf32>
    %103 = tpu.iota {dimensions = array<i32: 0>} : vector<95x48xi32>
    %104 = tpu.iota {dimensions = array<i32: 1>} : vector<95x48xi32>
    %c2_i32_56 = arith.constant 2 : i32
    %105 = vector.broadcast %c2_i32_56 : i32 to vector<95x48xi32>
    %106 = arith.muli %105, %104 : vector<95x48xi32>
    %107 = arith.cmpi eq, %103, %106 : vector<95x48xi32>
    %cst_57 = arith.constant 1.000000e+00 : f32
    %cst_58 = arith.constant 0.000000e+00 : f32
    %108 = vector.broadcast %cst_57 : f32 to vector<95x48xf32>
    %109 = vector.broadcast %cst_58 : f32 to vector<95x48xf32>
    %110 = arith.select %107, %108, %109 : vector<95x48xi1>, vector<95x48xf32>
    %cst_59 = arith.constant dense<0.000000e+00> : vector<4x48xf32>
    %111 = tpu.matmul %102, %110, %cst_59 {dimension_numbers = #tpu.dot_dimension_numbers<[1], [0], [0], [1], [0, 0, 1, 1], [], []>} : vector<4x95xf32>, vector<95x48xf32>, vector<4x48xf32> -> vector<4x48xf32>
    %c0_60 = arith.constant 0 : index
    %c0_61 = arith.constant 0 : index
    %112 = vector.load %arg7[%c0_60, %c0_61] : memref<1x120xf32, #tpu.memory_space<vmem>>, vector<1x120xf32>
    %113 = vector.extract_strided_slice %111 {offsets = [0, 0], sizes = [1, 48], strides = [1, 1]} : vector<4x48xf32> to vector<1x48xf32>
    %c0_62 = arith.constant 0 : index
    %c0_63 = arith.constant 0 : index
    %c0_64 = arith.constant 0 : index
    %114 = vector.load %arg6[%c0_62, %c0_63, %c0_64] : memref<4x48x120xf32, #tpu.memory_space<vmem>>, vector<1x48x120xf32>
    %115 = vector.shape_cast %114 : vector<1x48x120xf32> to vector<48x120xf32>
    %cst_65 = arith.constant dense<0.000000e+00> : vector<1x120xf32>
    %116 = tpu.matmul %113, %115, %cst_65 {dimension_numbers = #tpu.dot_dimension_numbers<[1], [0], [0], [1], [0, 0, 1, 1], [], []>} : vector<1x48xf32>, vector<48x120xf32>, vector<1x120xf32> -> vector<1x120xf32>
    %117 = arith.addf %112, %116 : vector<1x120xf32>
    %118 = vector.extract_strided_slice %111 {offsets = [1, 0], sizes = [1, 48], strides = [1, 1]} : vector<4x48xf32> to vector<1x48xf32>
    %c1_66 = arith.constant 1 : index
    %c0_67 = arith.constant 0 : index
    %c0_68 = arith.constant 0 : index
    %119 = vector.load %arg6[%c1_66, %c0_67, %c0_68] : memref<4x48x120xf32, #tpu.memory_space<vmem>>, vector<1x48x120xf32>
    %120 = vector.shape_cast %119 : vector<1x48x120xf32> to vector<48x120xf32>
    %cst_69 = arith.constant dense<0.000000e+00> : vector<1x120xf32>
    %121 = tpu.matmul %118, %120, %cst_69 {dimension_numbers = #tpu.dot_dimension_numbers<[1], [0], [0], [1], [0, 0, 1, 1], [], []>} : vector<1x48xf32>, vector<48x120xf32>, vector<1x120xf32> -> vector<1x120xf32>
    %122 = arith.addf %117, %121 : vector<1x120xf32>
    %123 = vector.extract_strided_slice %111 {offsets = [2, 0], sizes = [1, 48], strides = [1, 1]} : vector<4x48xf32> to vector<1x48xf32>
    %c2_70 = arith.constant 2 : index
    %c0_71 = arith.constant 0 : index
    %c0_72 = arith.constant 0 : index
    %124 = vector.load %arg6[%c2_70, %c0_71, %c0_72] : memref<4x48x120xf32, #tpu.memory_space<vmem>>, vector<1x48x120xf32>
    %125 = vector.shape_cast %124 : vector<1x48x120xf32> to vector<48x120xf32>
    %cst_73 = arith.constant dense<0.000000e+00> : vector<1x120xf32>
    %126 = tpu.matmul %123, %125, %cst_73 {dimension_numbers = #tpu.dot_dimension_numbers<[1], [0], [0], [1], [0, 0, 1, 1], [], []>} : vector<1x48xf32>, vector<48x120xf32>, vector<1x120xf32> -> vector<1x120xf32>
    %127 = arith.addf %122, %126 : vector<1x120xf32>
    %128 = vector.extract_strided_slice %111 {offsets = [3, 0], sizes = [1, 48], strides = [1, 1]} : vector<4x48xf32> to vector<1x48xf32>
    %c3_74 = arith.constant 3 : index
    %c0_75 = arith.constant 0 : index
    %c0_76 = arith.constant 0 : index
    %129 = vector.load %arg6[%c3_74, %c0_75, %c0_76] : memref<4x48x120xf32, #tpu.memory_space<vmem>>, vector<1x48x120xf32>
    %130 = vector.shape_cast %129 : vector<1x48x120xf32> to vector<48x120xf32>
    %cst_77 = arith.constant dense<0.000000e+00> : vector<1x120xf32>
    %131 = tpu.matmul %128, %130, %cst_77 {dimension_numbers = #tpu.dot_dimension_numbers<[1], [0], [0], [1], [0, 0, 1, 1], [], []>} : vector<1x48xf32>, vector<48x120xf32>, vector<1x120xf32> -> vector<1x120xf32>
    %132 = arith.addf %127, %131 : vector<1x120xf32>
    %cst_78 = arith.constant 0.000000e+00 : f32
    %133 = vector.broadcast %cst_78 : f32 to vector<1x120xf32>
    %134 = arith.maximumf %132, %133 : vector<1x120xf32>
    %c0_79 = arith.constant 0 : index
    %c0_80 = arith.constant 0 : index
    %135 = vector.load %arg8[%c0_79, %c0_80] : memref<120x60xf32, #tpu.memory_space<vmem>>, vector<120x60xf32>
    %cst_81 = arith.constant dense<0.000000e+00> : vector<1x60xf32>
    %136 = tpu.matmul %134, %135, %cst_81 {dimension_numbers = #tpu.dot_dimension_numbers<[1], [0], [0], [1], [0, 0, 1, 1], [], []>} : vector<1x120xf32>, vector<120x60xf32>, vector<1x60xf32> -> vector<1x60xf32>
    %c0_82 = arith.constant 0 : index
    %c0_83 = arith.constant 0 : index
    %137 = vector.load %arg9[%c0_82, %c0_83] : memref<1x60xf32, #tpu.memory_space<vmem>>, vector<1x60xf32>
    %138 = arith.addf %136, %137 : vector<1x60xf32>
    %cst_84 = arith.constant 0.000000e+00 : f32
    %139 = vector.broadcast %cst_84 : f32 to vector<1x60xf32>
    %140 = arith.maximumf %138, %139 : vector<1x60xf32>
    %c0_85 = arith.constant 0 : index
    %c0_86 = arith.constant 0 : index
    %141 = vector.load %arg10[%c0_85, %c0_86] : memref<60x10xf32, #tpu.memory_space<vmem>>, vector<60x10xf32>
    %cst_87 = arith.constant dense<0.000000e+00> : vector<1x10xf32>
    %142 = tpu.matmul %140, %141, %cst_87 {dimension_numbers = #tpu.dot_dimension_numbers<[1], [0], [0], [1], [0, 0, 1, 1], [], []>} : vector<1x60xf32>, vector<60x10xf32>, vector<1x10xf32> -> vector<1x10xf32>
    %c0_88 = arith.constant 0 : index
    %c0_89 = arith.constant 0 : index
    %143 = vector.load %arg11[%c0_88, %c0_89] : memref<1x10xf32, #tpu.memory_space<vmem>>, vector<1x10xf32>
    %144 = arith.addf %142, %143 : vector<1x10xf32>
    %c0_90 = arith.constant 0 : index
    %c0_91 = arith.constant 0 : index
    %c0_92 = arith.constant 0 : index
    %145 = vector.load %arg12[%c0_90, %c0_91, %c0_92] : memref<1x1x10xf32, #tpu.memory_space<vmem>>, vector<1x1x10xf32>
    %146 = vector.shape_cast %145 : vector<1x1x10xf32> to vector<1x10xf32>
    %147 = vector.shape_cast %144 : vector<1x10xf32> to vector<1x1x10xf32>
    tpu.vector_store %arg12[%c0_90, %c0_91, %c0_92], %147 {strides = array<i32>} : memref<1x1x10xf32, #tpu.memory_space<vmem>>, vector<1x1x10xf32>,
    return
  }
  func.func @transform_0(%arg0: i32) -> (i32, i32, i32) {
    %c0_i32 = arith.constant 0 : i32
    %c0_i32_0 = arith.constant 0 : i32
    %c0_i32_1 = arith.constant 0 : i32
    return %arg0, %c0_i32, %c0_i32_0 : i32, i32, i32
  }
  func.func @transform_1(%arg0: i32) -> (i32, i32, i32) {
    %c0_i32 = arith.constant 0 : i32
    %c0_i32_0 = arith.constant 0 : i32
    %c0_i32_1 = arith.constant 0 : i32
    %c0_i32_2 = arith.constant 0 : i32
    return %c0_i32, %c0_i32_0, %c0_i32_1 : i32, i32, i32
  }
  func.func @transform_2(%arg0: i32) -> (i32, i32) {
    %c0_i32 = arith.constant 0 : i32
    %c0_i32_0 = arith.constant 0 : i32
    %c0_i32_1 = arith.constant 0 : i32
    return %c0_i32, %c0_i32_0 : i32, i32
  }
  func.func @transform_3(%arg0: i32) -> (i32, i32, i32) {
    %c0_i32 = arith.constant 0 : i32
    %c0_i32_0 = arith.constant 0 : i32
    %c0_i32_1 = arith.constant 0 : i32
    %c0_i32_2 = arith.constant 0 : i32
    return %c0_i32, %c0_i32_0, %c0_i32_1 : i32, i32, i32
  }
  func.func @transform_4(%arg0: i32) -> (i32, i32) {
    %c0_i32 = arith.constant 0 : i32
    %c0_i32_0 = arith.constant 0 : i32
    %c0_i32_1 = arith.constant 0 : i32
    return %c0_i32, %c0_i32_0 : i32, i32
  }
  func.func @transform_5(%arg0: i32) -> (i32, i32, i32) {
    %c0_i32 = arith.constant 0 : i32
    %c0_i32_0 = arith.constant 0 : i32
    %c0_i32_1 = arith.constant 0 : i32
    %c0_i32_2 = arith.constant 0 : i32
    return %c0_i32, %c0_i32_0, %c0_i32_1 : i32, i32, i32
  }
  func.func @transform_6(%arg0: i32) -> (i32, i32) {
    %c0_i32 = arith.constant 0 : i32
    %c0_i32_0 = arith.constant 0 : i32
    %c0_i32_1 = arith.constant 0 : i32
    return %c0_i32, %c0_i32_0 : i32, i32
  }
  func.func @transform_7(%arg0: i32) -> (i32, i32) {
    %c0_i32 = arith.constant 0 : i32
    %c0_i32_0 = arith.constant 0 : i32
    %c0_i32_1 = arith.constant 0 : i32
    return %c0_i32, %c0_i32_0 : i32, i32
  }
  func.func @transform_8(%arg0: i32) -> (i32, i32) {
    %c0_i32 = arith.constant 0 : i32
    %c0_i32_0 = arith.constant 0 : i32
    %c0_i32_1 = arith.constant 0 : i32
    return %c0_i32, %c0_i32_0 : i32, i32
  }
  func.func @transform_9(%arg0: i32) -> (i32, i32) {
    %c0_i32 = arith.constant 0 : i32
    %c0_i32_0 = arith.constant 0 : i32
    %c0_i32_1 = arith.constant 0 : i32
    return %c0_i32, %c0_i32_0 : i32, i32
  }
  func.func @transform_10(%arg0: i32) -> (i32, i32) {
    %c0_i32 = arith.constant 0 : i32
    %c0_i32_0 = arith.constant 0 : i32
    %c0_i32_1 = arith.constant 0 : i32
    return %c0_i32, %c0_i32_0 : i32, i32
  }
  func.func @transform_11(%arg0: i32) -> (i32, i32, i32) {
    %c0_i32 = arith.constant 0 : i32
    %c0_i32_0 = arith.constant 0 : i32
    %c0_i32_1 = arith.constant 0 : i32
    return %arg0, %c0_i32, %c0_i32_0 : i32, i32, i32
  }
}

</mosaic_0001>

<llo_original>
// kernel: network_forward.1
$region0: #{network_forward.1}
  #allocation0 [shape = 'u32[]', space=smem, size = 0x4, offset = 0x4, fixed_abs, tag = 'smem constant byte address 0x4 - core index']
  #allocation1 [shape = 'u32[144,128]{1,0:T(1,128)}', space=vmem, size = 0x12000, scoped, tag = 'internal scratch']
  %s0 = inlined_call_operand.vmem [shape: f32[2,28,28], index: 0, kind: input, shape index: {}]
  %s1 = inlined_call_operand.hbm [shape: f32[5,28,144], index: 1, kind: input, shape index: {}]
  %s2 = inlined_call_operand.vmem [shape: f32[1,144], index: 2, kind: input, shape index: {}]
  %s3 = inlined_call_operand.vmem [shape: f32[5,72,96], index: 3, kind: input, shape index: {}]
  %s4 = inlined_call_operand.vmem [shape: f32[1,96], index: 4, kind: input, shape index: {}]
  %s5 = inlined_call_operand.hbm [shape: f32[4,48,120], index: 5, kind: input, shape index: {}]
  %s6 = inlined_call_operand.vmem [shape: f32[1,120], index: 6, kind: input, shape index: {}]
  %s7 = inlined_call_operand.vmem [shape: f32[120,60], index: 7, kind: input, shape index: {}]
  %s8 = inlined_call_operand.vmem [shape: f32[1,60], index: 8, kind: input, shape index: {}]
  %s9 = inlined_call_operand.vmem [shape: f32[60,10], index: 9, kind: input, shape index: {}]
  %s10 = inlined_call_operand.vmem [shape: f32[1,10], index: 10, kind: input, shape index: {}]
  %s11 = inlined_call_operand.hbm [shape: f32[2,1,10], index: 11, kind: output, shape index: {}]
  %s12 = sld [smem:[#allocation0]]
  $region85: #{network_forward.1} parent=0
    _
  %s14 = ssub.s32 1, %s12
  %s15 = scalar_select 0, %s14, %s12
  $region1: #{network_forward.1} parent=0
    #allocation2 [shape = 'u8[163840]{0}', space=vmem, size = 0x28000, scoped, tag = 'input window, operand 1, single buffered']
    #allocation3 [shape = 's32[2]{0}', space=sflag, size = 0x8, scoped, tag = 'scoped memory for network_forward.1']
    #allocation4 [shape = 's32[2]{0}', space=sflag, size = 0x8, scoped, tag = 'scoped memory for network_forward.1']
    #allocation5 [shape = 'u8[98304]{0}', space=vmem, size = 0x18000, scoped, tag = 'input window, operand 5, single buffered']
    #allocation6 [shape = 's32[1]{0}', space=sflag, size = 0x4, scoped, tag = 'scoped memory for network_forward.1']
    #allocation7 [shape = 'u8[1024]{0}', space=vmem, size = 0x400, scoped, tag = 'output window, operand 0']
    %16 = vsyncpa [#allocation3], 0
    %17 = vsyncpa [#allocation6], 0
    %18 = vsyncpa [#allocation4], 0
    %s19 = scalar_lea.sflag [#allocation4], 1
    %20 = vsyncpa %s19, 0
    loop: start=0, step=1, limit=4
    $region2: #{network_forward.1} parent=1 // loop_pre_header
      _
    $region3: #{network_forward.1} parent=1 // loop_header
      %s22 = sphi 0, %s26
      %p23 = scmp.ge.s32.totalorder %s22, 4
      %s32 = sphi 0, %s34
      %s35 = sphi 0, %s32
      %s36 = sphi 0, %s35
      %s52 = sphi 0, %s36
      %s56 = sphi 0, %s56
      %s58 = sphi 0, %s56
      %s59 = sphi 0, %s58
      %s73 = sphi 0, %s59
      %s77 = sphi 0, %s77
      %s79 = sphi 0, %s77
      %s80 = sphi 0, %s79
      %s94 = sphi 0, %s80
      %s98 = sphi 0, %s98
      %s100 = sphi 0, %s98
      %s101 = sphi 0, %s100
      %s115 = sphi 0, %s101
      %s119 = sphi 0, %s119
      %s121 = sphi 0, %s119
      %s122 = sphi 0, %s121
      %s136 = sphi 0, %s122
      %s140 = sphi 0, %s140
      %s142 = sphi 0, %s140
      %s143 = sphi 0, %s142
      %s157 = sphi 0, %s143
      %s161 = sphi 0, %s161
      %s163 = sphi 0, %s161
      %s164 = sphi 0, %s163
      %s178 = sphi 0, %s164
      %s182 = sphi 0, %s182
      %s184 = sphi 0, %s182
      %s185 = sphi 0, %s184
      %s199 = sphi 0, %s185
      %s203 = sphi 0, %s203
      %s205 = sphi 0, %s203
      %s206 = sphi 0, %s205
      %s220 = sphi 0, %s206
      %s224 = sphi 0, %s224
      %s226 = sphi 0, %s224
      %s227 = sphi 0, %s226
      %s241 = sphi 0, %s227
      %s245 = sphi 0, %s245
      %s247 = sphi 0, %s245
      %s248 = sphi 0, %s247
      %s262 = sphi 0, %s248
      %s268 = sphi 0, %s270
      %s271 = sphi 0, %s268
      %s272 = sphi 0, %s271
      %s288 = sphi 0, %s272
    $region4: #{network_forward.1} parent=1 // loop_header_branch
      %25 = sbr.rel (%p23) target = $region8
    $region5: #{network_forward.1} parent=1 // loop_body
      %s27 = ssub.s32 %s22, 1
      %s28 = ssub.s32 %s22, 2
      %s29 = sadd.s32 %s22, 1
      %s30 = ssub.s32 %s22, %s29
      %p31 = scmp.eq.s32.totalorder %s30, 0
      %s33 = sadd.s32 %s32, 1
      %s34 = scalar_select %p31, %s32, %s33
      %p37 = pneg %p31
      %p38 = scmp.eq.s32.totalorder %s22, 1
      %p39 = por %p37, %p38
      %p40 = scmp.ne.s32.totalorder %s32, %s35
      %p41 = scmp.eq.s32.totalorder %s22, 0
      %p42 = por %p40, %p41
      %p43 = scmp.ne.s32.totalorder %s32, %s35
      %p44 = scmp.eq.s32.totalorder %s27, 1
      %p45 = por %p43, %p44
      %p46 = scmp.ne.s32.totalorder %s35, %s36
      %p47 = scmp.eq.s32.totalorder %s27, 0
      %p48 = por %p46, %p47
      %p49 = scmp.ne.s32.totalorder %s35, %s36
      %p50 = scmp.eq.s32.totalorder %s28, 1
      %p51 = por %p49, %p50
      %p53 = scmp.ne.s32.totalorder %s36, %s52
      %p54 = scmp.eq.s32.totalorder %s28, 0
      %p55 = por %p53, %p54
      %s57 = sadd.s32 %s56, 1
      %p60 = scmp.eq.s32.totalorder %s22, 1
      %p61 = scmp.ne.s32.totalorder %s56, %s58
      %p62 = scmp.eq.s32.totalorder %s22, 0
      %p63 = por %p61, %p62
      %p64 = scmp.ne.s32.totalorder %s56, %s58
      %p65 = scmp.eq.s32.totalorder %s27, 1
      %p66 = por %p64, %p65
      %p67 = scmp.ne.s32.totalorder %s58, %s59
      %p68 = scmp.eq.s32.totalorder %s27, 0
      %p69 = por %p67, %p68
      %p70 = scmp.ne.s32.totalorder %s58, %s59
      %p71 = scmp.eq.s32.totalorder %s28, 1
      %p72 = por %p70, %p71
      %p74 = scmp.ne.s32.totalorder %s59, %s73
      %p75 = scmp.eq.s32.totalorder %s28, 0
      %p76 = por %p74, %p75
      %s78 = sadd.s32 %s77, 1
      %p81 = scmp.eq.s32.totalorder %s22, 1
      %p82 = scmp.ne.s32.totalorder %s77, %s79
      %p83 = scmp.eq.s32.totalorder %s22, 0
      %p84 = por %p82, %p83
      %p85 = scmp.ne.s32.totalorder %s77, %s79
      %p86 = scmp.eq.s32.totalorder %s27, 1
      %p87 = por %p85, %p86
      %p88 = scmp.ne.s32.totalorder %s79, %s80
      %p89 = scmp.eq.s32.totalorder %s27, 0
      %p90 = por %p88, %p89
      %p91 = scmp.ne.s32.totalorder %s79, %s80
      %p92 = scmp.eq.s32.totalorder %s28, 1
      %p93 = por %p91, %p92
      %p95 = scmp.ne.s32.totalorder %s80, %s94
      %p96 = scmp.eq.s32.totalorder %s28, 0
      %p97 = por %p95, %p96
      %s99 = sadd.s32 %s98, 1
      %p102 = scmp.eq.s32.totalorder %s22, 1
      %p103 = scmp.ne.s32.totalorder %s98, %s100
      %p104 = scmp.eq.s32.totalorder %s22, 0
      %p105 = por %p103, %p104
      %p106 = scmp.ne.s32.totalorder %s98, %s100
      %p107 = scmp.eq.s32.totalorder %s27, 1
      %p108 = por %p106, %p107
      %p109 = scmp.ne.s32.totalorder %s100, %s101
      %p110 = scmp.eq.s32.totalorder %s27, 0
      %p111 = por %p109, %p110
      %p112 = scmp.ne.s32.totalorder %s100, %s101
      %p113 = scmp.eq.s32.totalorder %s28, 1
      %p114 = por %p112, %p113
      %p116 = scmp.ne.s32.totalorder %s101, %s115
      %p117 = scmp.eq.s32.totalorder %s28, 0
      %p118 = por %p116, %p117
      %s120 = sadd.s32 %s119, 1
      %p123 = scmp.eq.s32.totalorder %s22, 1
      %p124 = scmp.ne.s32.totalorder %s119, %s121
      %p125 = scmp.eq.s32.totalorder %s22, 0
      %p126 = por %p124, %p125
      %p127 = scmp.ne.s32.totalorder %s119, %s121
      %p128 = scmp.eq.s32.totalorder %s27, 1
      %p129 = por %p127, %p128
      %p130 = scmp.ne.s32.totalorder %s121, %s122
      %p131 = scmp.eq.s32.totalorder %s27, 0
      %p132 = por %p130, %p131
      %p133 = scmp.ne.s32.totalorder %s121, %s122
      %p134 = scmp.eq.s32.totalorder %s28, 1
      %p135 = por %p133, %p134
      %p137 = scmp.ne.s32.totalorder %s122, %s136
      %p138 = scmp.eq.s32.totalorder %s28, 0
      %p139 = por %p137, %p138
      %s141 = sadd.s32 %s140, 1
      %p144 = scmp.eq.s32.totalorder %s22, 1
      %p145 = scmp.ne.s32.totalorder %s140, %s142
      %p146 = scmp.eq.s32.totalorder %s22, 0
      %p147 = por %p145, %p146
      %p148 = scmp.ne.s32.totalorder %s140, %s142
      %p149 = scmp.eq.s32.totalorder %s27, 1
      %p150 = por %p148, %p149
      %p151 = scmp.ne.s32.totalorder %s142, %s143
      %p152 = scmp.eq.s32.totalorder %s27, 0
      %p153 = por %p151, %p152
      %p154 = scmp.ne.s32.totalorder %s142, %s143
      %p155 = scmp.eq.s32.totalorder %s28, 1
      %p156 = por %p154, %p155
      %p158 = scmp.ne.s32.totalorder %s143, %s157
      %p159 = scmp.eq.s32.totalorder %s28, 0
      %p160 = por %p158, %p159
      %s162 = sadd.s32 %s161, 1
      %p165 = scmp.eq.s32.totalorder %s22, 1
      %p166 = scmp.ne.s32.totalorder %s161, %s163
      %p167 = scmp.eq.s32.totalorder %s22, 0
      %p168 = por %p166, %p167
      %p169 = scmp.ne.s32.totalorder %s161, %s163
      %p170 = scmp.eq.s32.totalorder %s27, 1
      %p171 = por %p169, %p170
      %p172 = scmp.ne.s32.totalorder %s163, %s164
      %p173 = scmp.eq.s32.totalorder %s27, 0
      %p174 = por %p172, %p173
      %p175 = scmp.ne.s32.totalorder %s163, %s164
      %p176 = scmp.eq.s32.totalorder %s28, 1
      %p177 = por %p175, %p176
      %p179 = scmp.ne.s32.totalorder %s164, %s178
      %p180 = scmp.eq.s32.totalorder %s28, 0
      %p181 = por %p179, %p180
      %s183 = sadd.s32 %s182, 1
      %p186 = scmp.eq.s32.totalorder %s22, 1
      %p187 = scmp.ne.s32.totalorder %s182, %s184
      %p188 = scmp.eq.s32.totalorder %s22, 0
      %p189 = por %p187, %p188
      %p190 = scmp.ne.s32.totalorder %s182, %s184
      %p191 = scmp.eq.s32.totalorder %s27, 1
      %p192 = por %p190, %p191
      %p193 = scmp.ne.s32.totalorder %s184, %s185
      %p194 = scmp.eq.s32.totalorder %s27, 0
      %p195 = por %p193, %p194
      %p196 = scmp.ne.s32.totalorder %s184, %s185
      %p197 = scmp.eq.s32.totalorder %s28, 1
      %p198 = por %p196, %p197
      %p200 = scmp.ne.s32.totalorder %s185, %s199
      %p201 = scmp.eq.s32.totalorder %s28, 0
      %p202 = por %p200, %p201
      %s204 = sadd.s32 %s203, 1
      %p207 = scmp.eq.s32.totalorder %s22, 1
      %p208 = scmp.ne.s32.totalorder %s203, %s205
      %p209 = scmp.eq.s32.totalorder %s22, 0
      %p210 = por %p208, %p209
      %p211 = scmp.ne.s32.totalorder %s203, %s205
      %p212 = scmp.eq.s32.totalorder %s27, 1
      %p213 = por %p211, %p212
      %p214 = scmp.ne.s32.totalorder %s205, %s206
      %p215 = scmp.eq.s32.totalorder %s27, 0
      %p216 = por %p214, %p215
      %p217 = scmp.ne.s32.totalorder %s205, %s206
      %p218 = scmp.eq.s32.totalorder %s28, 1
      %p219 = por %p217, %p218
      %p221 = scmp.ne.s32.totalorder %s206, %s220
      %p222 = scmp.eq.s32.totalorder %s28, 0
      %p223 = por %p221, %p222
      %s225 = sadd.s32 %s224, 1
      %p228 = scmp.eq.s32.totalorder %s22, 1
      %p229 = scmp.ne.s32.totalorder %s224, %s226
      %p230 = scmp.eq.s32.totalorder %s22, 0
      %p231 = por %p229, %p230
      %p232 = scmp.ne.s32.totalorder %s224, %s226
      %p233 = scmp.eq.s32.totalorder %s27, 1
      %p234 = por %p232, %p233
      %p235 = scmp.ne.s32.totalorder %s226, %s227
      %p236 = scmp.eq.s32.totalorder %s27, 0
      %p237 = por %p235, %p236
      %p238 = scmp.ne.s32.totalorder %s226, %s227
      %p239 = scmp.eq.s32.totalorder %s28, 1
      %p240 = por %p238, %p239
      %p242 = scmp.ne.s32.totalorder %s227, %s241
      %p243 = scmp.eq.s32.totalorder %s28, 0
      %p244 = por %p242, %p243
      %s246 = sadd.s32 %s245, 1
      %p249 = scmp.eq.s32.totalorder %s22, 1
      %p250 = scmp.ne.s32.totalorder %s245, %s247
      %p251 = scmp.eq.s32.totalorder %s22, 0
      %p252 = por %p250, %p251
      %p253 = scmp.ne.s32.totalorder %s245, %s247
      %p254 = scmp.eq.s32.totalorder %s27, 1
      %p255 = por %p253, %p254
      %p256 = scmp.ne.s32.totalorder %s247, %s248
      %p257 = scmp.eq.s32.totalorder %s27, 0
      %p258 = por %p256, %p257
      %p259 = scmp.ne.s32.totalorder %s247, %s248
      %p260 = scmp.eq.s32.totalorder %s28, 1
      %p261 = por %p259, %p260
      %p263 = scmp.ne.s32.totalorder %s248, %s262
      %p264 = scmp.eq.s32.totalorder %s28, 0
      %p265 = por %p263, %p264
      %s266 = ssub.s32 %s22, %s29
      %p267 = scmp.eq.s32.totalorder %s266, 0
      %s269 = sadd.s32 %s268, 1
      %s270 = scalar_select %p267, %s268, %s269
      %p273 = pneg %p267
      %p274 = scmp.eq.s32.totalorder %s22, 1
      %p275 = por %p273, %p274
      %p276 = scmp.ne.s32.totalorder %s268, %s271
      %p277 = scmp.eq.s32.totalorder %s22, 0
      %p278 = por %p276, %p277
      %p279 = scmp.ne.s32.totalorder %s268, %s271
      %p280 = scmp.eq.s32.totalorder %s27, 1
      %p281 = por %p279, %p280
      %p282 = scmp.ne.s32.totalorder %s271, %s272
      %p283 = scmp.eq.s32.totalorder %s27, 0
      %p284 = por %p282, %p283
      %p285 = scmp.ne.s32.totalorder %s271, %s272
      %p286 = scmp.eq.s32.totalorder %s28, 1
      %p287 = por %p285, %p286
      %p289 = scmp.ne.s32.totalorder %s272, %s288
      %p290 = scmp.eq.s32.totalorder %s28, 0
      %p291 = por %p289, %p290
      %p292 = scmp.le.s32.totalorder 1, %s22
      %p293 = scmp.lt.s32.totalorder %s22, 3
      %p294 = pnand %p292, %p293
      %p295 = pneg %p294
      // Predicated region
      $region9: #{network_forward.1} parent=5 // pred_check
        _
      $region10: #{network_forward.1} parent=5 // pred_check_branch
        %297 = sbr.rel (%p294) target = $region12
      $region11: #{network_forward.1} parent=5 // pred_region
        %s298 = ssub.s32 %s22, 1
        // Predicated region
        $region13: #{network_forward.1} parent=11 // pred_check
          %p299 = pneg %p69
        $region14: #{network_forward.1} parent=11 // pred_check_branch
          %301 = sbr.rel (%p299) target = $region16
        $region15: #{network_forward.1} parent=11 // pred_region
          %s303 = ssub.s32 5120, 5120
          %304 = vsyncadd [#allocation3], %s303
          %s305 = sshll.u32 [#allocation2], 4
          %s306 = int_to_ptr.vmem [resolvable:$true] %s305
          %311 = dma.hbm_to_vmem [thread:$0]  %s1, 5120, %s306, [#allocation3], 256, 256, 16
        $region16: #{network_forward.1} parent=11 // pred_fallthru
          _
        // Predicated region
        $region17: #{network_forward.1} parent=11 // pred_check
          %p312 = pneg %p90
        $region18: #{network_forward.1} parent=11 // pred_check_branch
          %314 = sbr.rel (%p312) target = $region20
        $region19: #{network_forward.1} parent=11 // pred_region
          _
        $region20: #{network_forward.1} parent=11 // pred_fallthru
          _
        // Predicated region
        $region21: #{network_forward.1} parent=11 // pred_check
          %p315 = pneg %p111
        $region22: #{network_forward.1} parent=11 // pred_check_branch
          %317 = sbr.rel (%p315) target = $region24
        $region23: #{network_forward.1} parent=11 // pred_region
          _
        $region24: #{network_forward.1} parent=11 // pred_fallthru
          _
        // Predicated region
        $region25: #{network_forward.1} parent=11 // pred_check
          %p318 = pneg %p132
        $region26: #{network_forward.1} parent=11 // pred_check_branch
          %320 = sbr.rel (%p318) target = $region28
        $region27: #{network_forward.1} parent=11 // pred_region
          _
        $region28: #{network_forward.1} parent=11 // pred_fallthru
          _
        // Predicated region
        $region29: #{network_forward.1} parent=11 // pred_check
          %p321 = pneg %p153
        $region30: #{network_forward.1} parent=11 // pred_check_branch
          %323 = sbr.rel (%p321) target = $region32
        $region31: #{network_forward.1} parent=11 // pred_region
          %s325 = ssub.s32 3072, 3072
          %326 = vsyncadd [#allocation6], %s325
          %s327 = sshll.u32 [#allocation5], 4
          %s328 = int_to_ptr.vmem [resolvable:$true] %s327
          %333 = dma.hbm_to_vmem [thread:$0]  %s5, 3072, %s328, [#allocation6], 128, 128, 8
        $region32: #{network_forward.1} parent=11 // pred_fallthru
          _
        // Predicated region
        $region33: #{network_forward.1} parent=11 // pred_check
          %p334 = pneg %p174
        $region34: #{network_forward.1} parent=11 // pred_check_branch
          %336 = sbr.rel (%p334) target = $region36
        $region35: #{network_forward.1} parent=11 // pred_region
          _
        $region36: #{network_forward.1} parent=11 // pred_fallthru
          _
        // Predicated region
        $region37: #{network_forward.1} parent=11 // pred_check
          %p337 = pneg %p195
        $region38: #{network_forward.1} parent=11 // pred_check_branch
          %339 = sbr.rel (%p337) target = $region40
        $region39: #{network_forward.1} parent=11 // pred_region
          _
        $region40: #{network_forward.1} parent=11 // pred_fallthru
          _
        // Predicated region
        $region41: #{network_forward.1} parent=11 // pred_check
          %p340 = pneg %p216
        $region42: #{network_forward.1} parent=11 // pred_check_branch
          %342 = sbr.rel (%p340) target = $region44
        $region43: #{network_forward.1} parent=11 // pred_region
          _
        $region44: #{network_forward.1} parent=11 // pred_fallthru
          _
        // Predicated region
        $region45: #{network_forward.1} parent=11 // pred_check
          %p343 = pneg %p237
        $region46: #{network_forward.1} parent=11 // pred_check_branch
          %345 = sbr.rel (%p343) target = $region48
        $region47: #{network_forward.1} parent=11 // pred_region
          _
        $region48: #{network_forward.1} parent=11 // pred_fallthru
          _
        // Predicated region
        $region49: #{network_forward.1} parent=11 // pred_check
          %p346 = pneg %p258
        $region50: #{network_forward.1} parent=11 // pred_check_branch
          %348 = sbr.rel (%p346) target = $region52
        $region51: #{network_forward.1} parent=11 // pred_region
          _
        $region52: #{network_forward.1} parent=11 // pred_fallthru
          _
      $region12: #{network_forward.1} parent=5 // pred_fallthru
        _
      %p349 = scmp.lt.s32.totalorder %s22, 2
      // Predicated region
      $region53: #{network_forward.1} parent=5 // pred_check
        %p350 = pneg %p349
      $region54: #{network_forward.1} parent=5 // pred_check_branch
        %352 = sbr.rel (%p350) target = $region56
      $region55: #{network_forward.1} parent=5 // pred_region
        // Predicated region
        $region57: #{network_forward.1} parent=55 // pred_check
          %p353 = pneg %p42
        $region58: #{network_forward.1} parent=55 // pred_check_branch
          %355 = sbr.rel (%p353) target = $region60
        $region59: #{network_forward.1} parent=55 // pred_region
          %p356 = scmp.lt.s32.totalorder %s22, 1
          %s357 = scalar_select %p356, %s22, 1
          %s358 = smul.addr %s357, 4
          %s359 = smul.addr %s358, 8
          %s360 = scalar_lea.vmem %s0, %s359
        $region60: #{network_forward.1} parent=55 // pred_fallthru
          _
      $region56: #{network_forward.1} parent=5 // pred_fallthru
        _
      %p361 = scmp.le.s32.totalorder 1, %s22
      %p362 = scmp.lt.s32.totalorder %s22, 3
      %p363 = pnand %p361, %p362
      %p364 = pneg %p363
      // Predicated region
      $region61: #{network_forward.1} parent=5 // pred_check
        _
      $region62: #{network_forward.1} parent=5 // pred_check_branch
        %366 = sbr.rel (%p363) target = $region64
      $region63: #{network_forward.1} parent=5 // pred_region
        %s367 = ssub.s32 %s22, 1
        // Predicated region
        $region65: #{network_forward.1} parent=63 // pred_check
          %p368 = pneg %p69
        $region66: #{network_forward.1} parent=63 // pred_check_branch
          %370 = sbr.rel (%p368) target = $region68
        $region67: #{network_forward.1} parent=63 // pred_region
          %371 = dma.done [#allocation3], 5120
        $region68: #{network_forward.1} parent=63 // pred_fallthru
          _
        // Predicated region
        $region69: #{network_forward.1} parent=63 // pred_check
          %p372 = pneg %p153
        $region70: #{network_forward.1} parent=63 // pred_check_branch
          %374 = sbr.rel (%p372) target = $region72
        $region71: #{network_forward.1} parent=63 // pred_region
          %375 = dma.done [#allocation6], 3072
        $region72: #{network_forward.1} parent=63 // pred_fallthru
          _
        %p376 = scmp.lt.s32.totalorder %s27, 1
        %s377 = scalar_select %p376, %s27, 1
        %s378 = smul.addr %s377, 4
        %s379 = smul.addr %s378, 8
        %s380 = scalar_lea.vmem %s0, %s379
        %p381 = pneg %p48
        %p382 = pneg %p45
        %p383 = pneg %p69
        %p384 = pneg %p66
        %p385 = pneg %p90
        %p386 = pneg %p87
        %p387 = pneg %p111
        %p388 = pneg %p108
        %p389 = pneg %p132
        %p390 = pneg %p129
        %p391 = pneg %p153
        %p392 = pneg %p150
        %p393 = pneg %p174
        %p394 = pneg %p171
        %p395 = pneg %p195
        %p396 = pneg %p192
        %p397 = pneg %p216
        %p398 = pneg %p213
        %p399 = pneg %p237
        %p400 = pneg %p234
        %p401 = pneg %p258
        %p402 = pneg %p255
        %p403 = pneg %p284
        %p404 = pneg %p281
        %s405 = sand.u32 %s271, 1
        %s406 = scalar_lea.sflag [#allocation4], %s405
        %s407 = sand.u32 %s271, 1
        %s408 = scalar_lea.vmem [#allocation7], %s407
        %p409 = scmp.lt.s32.totalorder %s27, 1
        %s410 = scalar_select %p409, %s27, 1
        %s411 = smul.addr %s410, 4
        %s412 = smul.addr %s411, 8
        %s413 = scalar_lea.vmem %s0, %s412
        %v414 = vld [vmem:[%s413] sm:$0xff]
        %v415 = vld [vmem:[%s413 + $0x8] sm:$0xff]
        %v416 = vld [vmem:[%s413 + $0x10] sm:$0xff]
        %v417 = vld [vmem:[%s413 + $0x18] sm:$0xf]
        %v418 = vld [vmem:[#allocation2] sm:$0xff]
        %v419 = vld [vmem:[#allocation2 + $0x8] sm:$0xff]
        %v420 = vld [vmem:[#allocation2 + $0x10] sm:$0xff]
        %v421 = vld [vmem:[#allocation2 + $0x18] sm:$0xff]
        %v422 = vld [vmem:[#allocation2 + $0x20] sm:$0xff]
        %v423 = vld [vmem:[#allocation2 + $0x28] sm:$0xff]
        %v424 = vld [vmem:[#allocation2 + $0x30] sm:$0xf]
        %v425 = vld [vmem:[#allocation2 + $0x38] sm:$0xf]
        %s426 = scalar_lea.vmem [#allocation2], 64
        %v427 = vld [vmem:[%s426] sm:$0xff]
        %v428 = vld [vmem:[%s426 + $0x8] sm:$0xff]
        %v429 = vld [vmem:[%s426 + $0x10] sm:$0xff]
        %v430 = vld [vmem:[%s426 + $0x18] sm:$0xff]
        %v431 = vld [vmem:[%s426 + $0x20] sm:$0xff]
        %v432 = vld [vmem:[%s426 + $0x28] sm:$0xff]
        %v433 = vld [vmem:[%s426 + $0x30] sm:$0xf]
        %v434 = vld [vmem:[%s426 + $0x38] sm:$0xf]
        %vm439 = vcmask 1046528
        %v440 = vrot.slane %v414, 1
        %v441 = vrot.slane %v415, 1
        %v442 = vsel %vm439, %v440, %v441
        %v443 = vrot.slane %v416, 1
        %v444 = vsel %vm439, %v441, %v443
        %v445 = vrot.slane %v417, 1
        %v446 = vsel %vm439, %v443, %v445
        %vm447 = vcmask 228352
        %v448 = vsel %vm447, %v442, 0
        %v450 = vsel %vm447, %v444, 0
        %v452 = vsel %vm447, %v446, 0
        %vm454 = vcmask 1043456
        %v456 = vsel %vm454, %v433, 0
        %v459 = vsel %vm454, %v434, 0
        %461 = vmatprep.subr.mxu0 %v428
        %462 = vmatpush1.msra.mxu0 %v427
        %463 = vmatprep.subr.mxu0 %v430
        %464 = vmatpush1.msra.mxu0 %v429
        %465 = vmatprep.subr.mxu0 %v432
        %466 = vmatpush1.msra.mxu0 %v431
        %467 = vmatprep.subr.mxu0 %v459
        %468 = vmatpush1.msra.mxu0 %v456
        %469 = vmatprep.subr.mxu0 0.0
        %470 = vmatpush1.msra.mxu0 0.0
        %471 = vmatprep.subr.mxu0 0.0
        %472 = vmatpush1.msra.mxu0 0.0
        %473 = vmatprep.subr.mxu0 0.0
        %474 = vmatpush1.msra.mxu0 0.0
        %475 = vmatprep.subr.mxu0 0.0
        %476 = vmatpush1.msra.mxu0 0.0
        %477 = vmatprep.subr.mxu0 0.0
        %478 = vmatpush1.msra.mxu0 0.0
        %479 = vmatprep.subr.mxu0 0.0
        %480 = vmatpush1.msra.mxu0 0.0
        %481 = vmatprep.subr.mxu0 0.0
        %482 = vmatpush1.msra.mxu0 0.0
        %483 = vmatprep.subr.mxu0 0.0
        %484 = vmatpush1.msra.mxu0 0.0
        %485 = vmatprep.subr.mxu0 0.0
        %486 = vmatpush1.msra.mxu0 0.0
        %487 = vmatprep.subr.mxu0 0.0
        %488 = vmatpush1.msra.mxu0 0.0
        %489 = vmatprep.subr.mxu0 0.0
        %490 = vmatpush1.msra.mxu0 0.0
        %491 = vmatprep.subr.mxu0 0.0
        %492 = vmatpush1.msra.mxu0 0.0
        %493 = vmatprep.subr.mxu0 0.0
        %494 = vmatpush1.msra.mxu0 0.0
        %495 = vmatprep.subr.mxu0 0.0
        %496 = vmatpush1.msra.mxu0 0.0
        %497 = vmatprep.subr.mxu0 0.0
        %498 = vmatpush1.msra.mxu0 0.0
        %499 = vmatprep.subr.mxu0 0.0
        %500 = vmatpush1.msra.mxu0 0.0
        %501 = vmatprep.subr.mxu0 0.0
        %502 = vmatpush1.msra.mxu0 0.0
        %503 = vmatprep.subr.mxu0 0.0
        %504 = vmatpush1.msra.mxu0 0.0
        %505 = vmatprep.subr.mxu0 0.0
        %506 = vmatpush1.msra.mxu0 0.0
        %507 = vmatprep.subr.mxu0 0.0
        %508 = vmatpush1.msra.mxu0 0.0
        %509 = vmatprep.subr.mxu0 0.0
        %510 = vmatpush1.msra.mxu0 0.0
        %511 = vmatprep.subr.mxu0 0.0
        %512 = vmatpush1.msra.mxu0 0.0
        %513 = vmatprep.subr.mxu0 0.0
        %514 = vmatpush1.msra.mxu0 0.0
        %515 = vmatprep.subr.mxu0 0.0
        %516 = vmatpush1.msra.mxu0 0.0
        %517 = vmatprep.subr.mxu0 0.0
        %518 = vmatpush1.msra.mxu0 0.0
        %519 = vmatprep.subr.mxu0 0.0
        %520 = vmatpush1.msra.mxu0 0.0
        %521 = vmatprep.subr.mxu0 0.0
        %522 = vmatpush1.msra.mxu0 0.0
        %523 = vmatprep.subr.mxu0 0.0
        %524 = vmatpush1.msra.mxu0 0.0
        %525 = vmatprep.mubr.f32.mxu0 0.0
        %526 = vmatmul.mubr.f32.gmra.mrb[0].mxu0 %v448
        %v527 = vpop.f32.mrb[0].mxu0
        %v528 = vadd.f32 0.0, %v527
        %v529 = vpop.f32.mrb[0].mxu0
        %v530 = vadd.f32 0.0, %v529
        %531 = vmatprep.mubr.f32.mxu0 0.0
        %532 = vmatmul.mubr.f32.gmra.mrb[0].mxu0 %v450
        %v533 = vpop.f32.mrb[0].mxu0
        %v534 = vadd.f32 0.0, %v533
        %v535 = vpop.f32.mrb[0].mxu0
        %v536 = vadd.f32 0.0, %v535
        %537 = vmatprep.mubr.f32.mxu0 0.0
        %538 = vmatmul.mubr.f32.gmra.mrb[0].mxu0 %v452
        %v539 = vpop.f32.mrb[0].mxu0
        %v540 = vadd.f32 0.0, %v539
        %v541 = vpop.f32.mrb[0].mxu0
        %v542 = vadd.f32 0.0, %v541
        %543 = vdwg.mxu0
        %v544 = vsel %vm447, %v414, 0
        %v546 = vsel %vm447, %v415, 0
        %v548 = vsel %vm447, %v416, 0
        %v551 = vsel %vm454, %v424, 0
        %v554 = vsel %vm454, %v425, 0
        %556 = vmatprep.subr.mxu0 %v419
        %557 = vmatpush1.msra.mxu0 %v418
        %558 = vmatprep.subr.mxu0 %v421
        %559 = vmatpush1.msra.mxu0 %v420
        %560 = vmatprep.subr.mxu0 %v423
        %561 = vmatpush1.msra.mxu0 %v422
        %562 = vmatprep.subr.mxu0 %v554
        %563 = vmatpush1.msra.mxu0 %v551
        %564 = vmatprep.subr.mxu0 0.0
        %565 = vmatpush1.msra.mxu0 0.0
        %566 = vmatprep.subr.mxu0 0.0
        %567 = vmatpush1.msra.mxu0 0.0
        %568 = vmatprep.subr.mxu0 0.0
        %569 = vmatpush1.msra.mxu0 0.0
        %570 = vmatprep.subr.mxu0 0.0
        %571 = vmatpush1.msra.mxu0 0.0
        %572 = vmatprep.subr.mxu0 0.0
        %573 = vmatpush1.msra.mxu0 0.0
        %574 = vmatprep.subr.mxu0 0.0
        %575 = vmatpush1.msra.mxu0 0.0
        %576 = vmatprep.subr.mxu0 0.0
        %577 = vmatpush1.msra.mxu0 0.0
        %578 = vmatprep.subr.mxu0 0.0
        %579 = vmatpush1.msra.mxu0 0.0
        %580 = vmatprep.subr.mxu0 0.0
        %581 = vmatpush1.msra.mxu0 0.0
        %582 = vmatprep.subr.mxu0 0.0
        %583 = vmatpush1.msra.mxu0 0.0
        %584 = vmatprep.subr.mxu0 0.0
        %585 = vmatpush1.msra.mxu0 0.0
        %586 = vmatprep.subr.mxu0 0.0
        %587 = vmatpush1.msra.mxu0 0.0
        %588 = vmatprep.subr.mxu0 0.0
        %589 = vmatpush1.msra.mxu0 0.0
        %590 = vmatprep.subr.mxu0 0.0
        %591 = vmatpush1.msra.mxu0 0.0
        %592 = vmatprep.subr.mxu0 0.0
        %593 = vmatpush1.msra.mxu0 0.0
        %594 = vmatprep.subr.mxu0 0.0
        %595 = vmatpush1.msra.mxu0 0.0
        %596 = vmatprep.subr.mxu0 0.0
        %597 = vmatpush1.msra.mxu0 0.0
        %598 = vmatprep.subr.mxu0 0.0
        %599 = vmatpush1.msra.mxu0 0.0
        %600 = vmatprep.subr.mxu0 0.0
        %601 = vmatpush1.msra.mxu0 0.0
        %602 = vmatprep.subr.mxu0 0.0
        %603 = vmatpush1.msra.mxu0 0.0
        %604 = vmatprep.subr.mxu0 0.0
        %605 = vmatpush1.msra.mxu0 0.0
        %606 = vmatprep.subr.mxu0 0.0
        %607 = vmatpush1.msra.mxu0 0.0
        %608 = vmatprep.subr.mxu0 0.0
        %609 = vmatpush1.msra.mxu0 0.0
        %610 = vmatprep.subr.mxu0 0.0
        %611 = vmatpush1.msra.mxu0 0.0
        %612 = vmatprep.subr.mxu0 0.0
        %613 = vmatpush1.msra.mxu0 0.0
        %614 = vmatprep.subr.mxu0 0.0
        %615 = vmatpush1.msra.mxu0 0.0
        %616 = vmatprep.subr.mxu0 0.0
        %617 = vmatpush1.msra.mxu0 0.0
        %618 = vmatprep.subr.mxu0 0.0
        %619 = vmatpush1.msra.mxu0 0.0
        %620 = vmatprep.mubr.f32.mxu0 0.0
        %621 = vmatmul.mubr.f32.gmra.mrb[0].mxu0 %v544
        %v622 = vpop.f32.mrb[0].mxu0
        %v623 = vadd.f32 %v528, %v622
        %v624 = vpop.f32.mrb[0].mxu0
        %v625 = vadd.f32 %v530, %v624
        %626 = vmatprep.mubr.f32.mxu0 0.0
        %627 = vmatmul.mubr.f32.gmra.mrb[0].mxu0 %v546
        %v628 = vpop.f32.mrb[0].mxu0
        %v629 = vadd.f32 %v534, %v628
        %v630 = vpop.f32.mrb[0].mxu0
        %v631 = vadd.f32 %v536, %v630
        %632 = vmatprep.mubr.f32.mxu0 0.0
        %633 = vmatmul.mubr.f32.gmra.mrb[0].mxu0 %v548
        %v634 = vpop.f32.mrb[0].mxu0
        %v635 = vadd.f32 %v540, %v634
        %v636 = vpop.f32.mrb[0].mxu0
        %v637 = vadd.f32 %v542, %v636
        %638 = vdwg.mxu0
        %s639 = scalar_lea.vmem [#allocation2], 128
        %v640 = vld [vmem:[%s639] sm:$0xff]
        %v641 = vld [vmem:[%s639 + $0x8] sm:$0xff]
        %v642 = vld [vmem:[%s639 + $0x10] sm:$0xff]
        %v643 = vld [vmem:[%s639 + $0x18] sm:$0xff]
        %v644 = vld [vmem:[%s639 + $0x20] sm:$0xff]
        %v645 = vld [vmem:[%s639 + $0x28] sm:$0xff]
        %v646 = vld [vmem:[%s639 + $0x30] sm:$0xf]
        %v647 = vld [vmem:[%s639 + $0x38] sm:$0xf]
        %vm648 = vcmask 1045504
        %v649 = vrot.slane %v414, 2
        %v650 = vrot.slane %v415, 2
        %v651 = vsel %vm648, %v649, %v650
        %v652 = vrot.slane %v416, 2
        %v653 = vsel %vm648, %v650, %v652
        %v654 = vrot.slane %v417, 2
        %v655 = vsel %vm648, %v652, %v654
        %v656 = vsel %vm447, %v651, 0
        %v658 = vsel %vm447, %v653, 0
        %v660 = vsel %vm447, %v655, 0
        %v663 = vsel %vm454, %v646, 0
        %v666 = vsel %vm454, %v647, 0
        %668 = vmatprep.subr.mxu0 %v641
        %669 = vmatpush1.msra.mxu0 %v640
        %670 = vmatprep.subr.mxu0 %v643
        %671 = vmatpush1.msra.mxu0 %v642
        %672 = vmatprep.subr.mxu0 %v645
        %673 = vmatpush1.msra.mxu0 %v644
        %674 = vmatprep.subr.mxu0 %v666
        %675 = vmatpush1.msra.mxu0 %v663
        %676 = vmatprep.subr.mxu0 0.0
        %677 = vmatpush1.msra.mxu0 0.0
        %678 = vmatprep.subr.mxu0 0.0
        %679 = vmatpush1.msra.mxu0 0.0
        %680 = vmatprep.subr.mxu0 0.0
        %681 = vmatpush1.msra.mxu0 0.0
        %682 = vmatprep.subr.mxu0 0.0
        %683 = vmatpush1.msra.mxu0 0.0
        %684 = vmatprep.subr.mxu0 0.0
        %685 = vmatpush1.msra.mxu0 0.0
        %686 = vmatprep.subr.mxu0 0.0
        %687 = vmatpush1.msra.mxu0 0.0
        %688 = vmatprep.subr.mxu0 0.0
        %689 = vmatpush1.msra.mxu0 0.0
        %690 = vmatprep.subr.mxu0 0.0
        %691 = vmatpush1.msra.mxu0 0.0
        %692 = vmatprep.subr.mxu0 0.0
        %693 = vmatpush1.msra.mxu0 0.0
        %694 = vmatprep.subr.mxu0 0.0
        %695 = vmatpush1.msra.mxu0 0.0
        %696 = vmatprep.subr.mxu0 0.0
        %697 = vmatpush1.msra.mxu0 0.0
        %698 = vmatprep.subr.mxu0 0.0
        %699 = vmatpush1.msra.mxu0 0.0
        %700 = vmatprep.subr.mxu0 0.0
        %701 = vmatpush1.msra.mxu0 0.0
        %702 = vmatprep.subr.mxu0 0.0
        %703 = vmatpush1.msra.mxu0 0.0
        %704 = vmatprep.subr.mxu0 0.0
        %705 = vmatpush1.msra.mxu0 0.0
        %706 = vmatprep.subr.mxu0 0.0
        %707 = vmatpush1.msra.mxu0 0.0
        %708 = vmatprep.subr.mxu0 0.0
        %709 = vmatpush1.msra.mxu0 0.0
        %710 = vmatprep.subr.mxu0 0.0
        %711 = vmatpush1.msra.mxu0 0.0
        %712 = vmatprep.subr.mxu0 0.0
        %713 = vmatpush1.msra.mxu0 0.0
        %714 = vmatprep.subr.mxu0 0.0
        %715 = vmatpush1.msra.mxu0 0.0
        %716 = vmatprep.subr.mxu0 0.0
        %717 = vmatpush1.msra.mxu0 0.0
        %718 = vmatprep.subr.mxu0 0.0
        %719 = vmatpush1.msra.mxu0 0.0
        %720 = vmatprep.subr.mxu0 0.0
        %721 = vmatpush1.msra.mxu0 0.0
        %722 = vmatprep.subr.mxu0 0.0
        %723 = vmatpush1.msra.mxu0 0.0
        %724 = vmatprep.subr.mxu0 0.0
        %725 = vmatpush1.msra.mxu0 0.0
        %726 = vmatprep.subr.mxu0 0.0
        %727 = vmatpush1.msra.mxu0 0.0
        %728 = vmatprep.subr.mxu0 0.0
        %729 = vmatpush1.msra.mxu0 0.0
        %730 = vmatprep.subr.mxu0 0.0
        %731 = vmatpush1.msra.mxu0 0.0
        %732 = vmatprep.mubr.f32.mxu0 0.0
        %733 = vmatmul.mubr.f32.gmra.mrb[0].mxu0 %v656
        %v734 = vpop.f32.mrb[0].mxu0
        %v735 = vadd.f32 0.0, %v734
        %v736 = vpop.f32.mrb[0].mxu0
        %v737 = vadd.f32 0.0, %v736
        %738 = vmatprep.mubr.f32.mxu0 0.0
        %739 = vmatmul.mubr.f32.gmra.mrb[0].mxu0 %v658
        %v740 = vpop.f32.mrb[0].mxu0
        %v741 = vadd.f32 0.0, %v740
        %v742 = vpop.f32.mrb[0].mxu0
        %v743 = vadd.f32 0.0, %v742
        %744 = vmatprep.mubr.f32.mxu0 0.0
        %745 = vmatmul.mubr.f32.gmra.mrb[0].mxu0 %v660
        %v746 = vpop.f32.mrb[0].mxu0
        %v747 = vadd.f32 0.0, %v746
        %v748 = vpop.f32.mrb[0].mxu0
        %v749 = vadd.f32 0.0, %v748
        %750 = vdwg.mxu0
        %v751 = vadd.f32 %v623, %v735
        %v752 = vadd.f32 %v625, %v737
        %v753 = vadd.f32 %v629, %v741
        %v754 = vadd.f32 %v631, %v743
        %v755 = vadd.f32 %v635, %v747
        %v756 = vadd.f32 %v637, %v749
        %s757 = scalar_lea.vmem [#allocation2], 192
        %v758 = vld [vmem:[%s757] sm:$0xff]
        %v759 = vld [vmem:[%s757 + $0x8] sm:$0xff]
        %v760 = vld [vmem:[%s757 + $0x10] sm:$0xff]
        %v761 = vld [vmem:[%s757 + $0x18] sm:$0xff]
        %v762 = vld [vmem:[%s757 + $0x20] sm:$0xff]
        %v763 = vld [vmem:[%s757 + $0x28] sm:$0xff]
        %v764 = vld [vmem:[%s757 + $0x30] sm:$0xf]
        %v765 = vld [vmem:[%s757 + $0x38] sm:$0xf]
        %vm766 = vcmask 1044480
        %v767 = vrot.slane %v414, 3
        %v768 = vrot.slane %v415, 3
        %v769 = vsel %vm766, %v767, %v768
        %v770 = vrot.slane %v416, 3
        %v771 = vsel %vm766, %v768, %v770
        %v772 = vrot.slane %v417, 3
        %v773 = vsel %vm766, %v770, %v772
        %v774 = vsel %vm447, %v769, 0
        %v776 = vsel %vm447, %v771, 0
        %v778 = vsel %vm447, %v773, 0
        %v781 = vsel %vm454, %v764, 0
        %v784 = vsel %vm454, %v765, 0
        %786 = vmatprep.subr.mxu0 %v759
        %787 = vmatpush1.msra.mxu0 %v758
        %788 = vmatprep.subr.mxu0 %v761
        %789 = vmatpush1.msra.mxu0 %v760
        %790 = vmatprep.subr.mxu0 %v763
        %791 = vmatpush1.msra.mxu0 %v762
        %792 = vmatprep.subr.mxu0 %v784
        %793 = vmatpush1.msra.mxu0 %v781
        %794 = vmatprep.subr.mxu0 0.0
        %795 = vmatpush1.msra.mxu0 0.0
        %796 = vmatprep.subr.mxu0 0.0
        %797 = vmatpush1.msra.mxu0 0.0
        %798 = vmatprep.subr.mxu0 0.0
        %799 = vmatpush1.msra.mxu0 0.0
        %800 = vmatprep.subr.mxu0 0.0
        %801 = vmatpush1.msra.mxu0 0.0
        %802 = vmatprep.subr.mxu0 0.0
        %803 = vmatpush1.msra.mxu0 0.0
        %804 = vmatprep.subr.mxu0 0.0
        %805 = vmatpush1.msra.mxu0 0.0
        %806 = vmatprep.subr.mxu0 0.0
        %807 = vmatpush1.msra.mxu0 0.0
        %808 = vmatprep.subr.mxu0 0.0
        %809 = vmatpush1.msra.mxu0 0.0
        %810 = vmatprep.subr.mxu0 0.0
        %811 = vmatpush1.msra.mxu0 0.0
        %812 = vmatprep.subr.mxu0 0.0
        %813 = vmatpush1.msra.mxu0 0.0
        %814 = vmatprep.subr.mxu0 0.0
        %815 = vmatpush1.msra.mxu0 0.0
        %816 = vmatprep.subr.mxu0 0.0
        %817 = vmatpush1.msra.mxu0 0.0
        %818 = vmatprep.subr.mxu0 0.0
        %819 = vmatpush1.msra.mxu0 0.0
        %820 = vmatprep.subr.mxu0 0.0
        %821 = vmatpush1.msra.mxu0 0.0
        %822 = vmatprep.subr.mxu0 0.0
        %823 = vmatpush1.msra.mxu0 0.0
        %824 = vmatprep.subr.mxu0 0.0
        %825 = vmatpush1.msra.mxu0 0.0
        %826 = vmatprep.subr.mxu0 0.0
        %827 = vmatpush1.msra.mxu0 0.0
        %828 = vmatprep.subr.mxu0 0.0
        %829 = vmatpush1.msra.mxu0 0.0
        %830 = vmatprep.subr.mxu0 0.0
        %831 = vmatpush1.msra.mxu0 0.0
        %832 = vmatprep.subr.mxu0 0.0
        %833 = vmatpush1.msra.mxu0 0.0
        %834 = vmatprep.subr.mxu0 0.0
        %835 = vmatpush1.msra.mxu0 0.0
        %836 = vmatprep.subr.mxu0 0.0
        %837 = vmatpush1.msra.mxu0 0.0
        %838 = vmatprep.subr.mxu0 0.0
        %839 = vmatpush1.msra.mxu0 0.0
        %840 = vmatprep.subr.mxu0 0.0
        %841 = vmatpush1.msra.mxu0 0.0
        %842 = vmatprep.subr.mxu0 0.0
        %843 = vmatpush1.msra.mxu0 0.0
        %844 = vmatprep.subr.mxu0 0.0
        %845 = vmatpush1.msra.mxu0 0.0
        %846 = vmatprep.subr.mxu0 0.0
        %847 = vmatpush1.msra.mxu0 0.0
        %848 = vmatprep.subr.mxu0 0.0
        %849 = vmatpush1.msra.mxu0 0.0
        %850 = vmatprep.mubr.f32.mxu0 0.0
        %851 = vmatmul.mubr.f32.gmra.mrb[0].mxu0 %v774
        %v852 = vpop.f32.mrb[0].mxu0
        %v853 = vadd.f32 0.0, %v852
        %v854 = vpop.f32.mrb[0].mxu0
        %v855 = vadd.f32 0.0, %v854
        %856 = vmatprep.mubr.f32.mxu0 0.0
        %857 = vmatmul.mubr.f32.gmra.mrb[0].mxu0 %v776
        %v858 = vpop.f32.mrb[0].mxu0
        %v859 = vadd.f32 0.0, %v858
        %v860 = vpop.f32.mrb[0].mxu0
        %v861 = vadd.f32 0.0, %v860
        %862 = vmatprep.mubr.f32.mxu0 0.0
        %863 = vmatmul.mubr.f32.gmra.mrb[0].mxu0 %v778
        %v864 = vpop.f32.mrb[0].mxu0
        %v865 = vadd.f32 0.0, %v864
        %v866 = vpop.f32.mrb[0].mxu0
        %v867 = vadd.f32 0.0, %v866
        %868 = vdwg.mxu0
        %v869 = vadd.f32 %v751, %v853
        %v870 = vadd.f32 %v752, %v855
        %v871 = vadd.f32 %v753, %v859
        %v872 = vadd.f32 %v754, %v861
        %v873 = vadd.f32 %v755, %v865
        %v874 = vadd.f32 %v756, %v867
        %s875 = scalar_lea.vmem [#allocation2], 256
        %v876 = vld [vmem:[%s875] sm:$0xff]
        %v877 = vld [vmem:[%s875 + $0x8] sm:$0xff]
        %v878 = vld [vmem:[%s875 + $0x10] sm:$0xff]
        %v879 = vld [vmem:[%s875 + $0x18] sm:$0xff]
        %v880 = vld [vmem:[%s875 + $0x20] sm:$0xff]
        %v881 = vld [vmem:[%s875 + $0x28] sm:$0xff]
        %v882 = vld [vmem:[%s875 + $0x30] sm:$0xf]
        %v883 = vld [vmem:[%s875 + $0x38] sm:$0xf]
        %v884 = vrot.slane %v414, 4
        %v885 = vrot.slane %v415, 4
        %v886 = vsel %vm454, %v884, %v885
        %v887 = vrot.slane %v416, 4
        %v888 = vsel %vm454, %v885, %v887
        %v889 = vrot.slane %v417, 4
        %v890 = vsel %vm454, %v887, %v889
        %v891 = vsel %vm447, %v886, 0
        %v893 = vsel %vm447, %v888, 0
        %v895 = vsel %vm447, %v890, 0
        %v898 = vsel %vm454, %v882, 0
        %v901 = vsel %vm454, %v883, 0
        %903 = vmatprep.subr.mxu0 %v877
        %904 = vmatpush1.msra.mxu0 %v876
        %905 = vmatprep.subr.mxu0 %v879
        %906 = vmatpush1.msra.mxu0 %v878
        %907 = vmatprep.subr.mxu0 %v881
        %908 = vmatpush1.msra.mxu0 %v880
        %909 = vmatprep.subr.mxu0 %v901
        %910 = vmatpush1.msra.mxu0 %v898
        %911 = vmatprep.subr.mxu0 0.0
        %912 = vmatpush1.msra.mxu0 0.0
        %913 = vmatprep.subr.mxu0 0.0
        %914 = vmatpush1.msra.mxu0 0.0
        %915 = vmatprep.subr.mxu0 0.0
        %916 = vmatpush1.msra.mxu0 0.0
        %917 = vmatprep.subr.mxu0 0.0
        %918 = vmatpush1.msra.mxu0 0.0
        %919 = vmatprep.subr.mxu0 0.0
        %920 = vmatpush1.msra.mxu0 0.0
        %921 = vmatprep.subr.mxu0 0.0
        %922 = vmatpush1.msra.mxu0 0.0
        %923 = vmatprep.subr.mxu0 0.0
        %924 = vmatpush1.msra.mxu0 0.0
        %925 = vmatprep.subr.mxu0 0.0
        %926 = vmatpush1.msra.mxu0 0.0
        %927 = vmatprep.subr.mxu0 0.0
        %928 = vmatpush1.msra.mxu0 0.0
        %929 = vmatprep.subr.mxu0 0.0
        %930 = vmatpush1.msra.mxu0 0.0
        %931 = vmatprep.subr.mxu0 0.0
        %932 = vmatpush1.msra.mxu0 0.0
        %933 = vmatprep.subr.mxu0 0.0
        %934 = vmatpush1.msra.mxu0 0.0
        %935 = vmatprep.subr.mxu0 0.0
        %936 = vmatpush1.msra.mxu0 0.0
        %937 = vmatprep.subr.mxu0 0.0
        %938 = vmatpush1.msra.mxu0 0.0
        %939 = vmatprep.subr.mxu0 0.0
        %940 = vmatpush1.msra.mxu0 0.0
        %941 = vmatprep.subr.mxu0 0.0
        %942 = vmatpush1.msra.mxu0 0.0
        %943 = vmatprep.subr.mxu0 0.0
        %944 = vmatpush1.msra.mxu0 0.0
        %945 = vmatprep.subr.mxu0 0.0
        %946 = vmatpush1.msra.mxu0 0.0
        %947 = vmatprep.subr.mxu0 0.0
        %948 = vmatpush1.msra.mxu0 0.0
        %949 = vmatprep.subr.mxu0 0.0
        %950 = vmatpush1.msra.mxu0 0.0
        %951 = vmatprep.subr.mxu0 0.0
        %952 = vmatpush1.msra.mxu0 0.0
        %953 = vmatprep.subr.mxu0 0.0
        %954 = vmatpush1.msra.mxu0 0.0
        %955 = vmatprep.subr.mxu0 0.0
        %956 = vmatpush1.msra.mxu0 0.0
        %957 = vmatprep.subr.mxu0 0.0
        %958 = vmatpush1.msra.mxu0 0.0
        %959 = vmatprep.subr.mxu0 0.0
        %960 = vmatpush1.msra.mxu0 0.0
        %961 = vmatprep.subr.mxu0 0.0
        %962 = vmatpush1.msra.mxu0 0.0
        %963 = vmatprep.subr.mxu0 0.0
        %964 = vmatpush1.msra.mxu0 0.0
        %965 = vmatprep.subr.mxu0 0.0
        %966 = vmatpush1.msra.mxu0 0.0
        %967 = vmatprep.mubr.f32.mxu0 0.0
        %968 = vmatmul.mubr.f32.gmra.mrb[0].mxu0 %v891
        %v969 = vpop.f32.mrb[0].mxu0
        %v970 = vadd.f32 0.0, %v969
        %v971 = vpop.f32.mrb[0].mxu0
        %v972 = vadd.f32 0.0, %v971
        %973 = vmatprep.mubr.f32.mxu0 0.0
        %974 = vmatmul.mubr.f32.gmra.mrb[0].mxu0 %v893
        %v975 = vpop.f32.mrb[0].mxu0
        %v976 = vadd.f32 0.0, %v975
        %v977 = vpop.f32.mrb[0].mxu0
        %v978 = vadd.f32 0.0, %v977
        %979 = vmatprep.mubr.f32.mxu0 0.0
        %980 = vmatmul.mubr.f32.gmra.mrb[0].mxu0 %v895
        %v981 = vpop.f32.mrb[0].mxu0
        %v982 = vadd.f32 0.0, %v981
        %v983 = vpop.f32.mrb[0].mxu0
        %v984 = vadd.f32 0.0, %v983
        %985 = vdwg.mxu0
        %v986 = vadd.f32 %v869, %v970
        %v987 = vadd.f32 %v870, %v972
        %v988 = vadd.f32 %v871, %v976
        %v989 = vadd.f32 %v872, %v978
        %v990 = vadd.f32 %v873, %v982
        %v991 = vadd.f32 %v874, %v984
        %v992 = vld [vmem:[%s2] sm:$0x3]
        %v994 = vlaneseq
        %v995 = vshrl.u32 %v994, 7
        %v996 = vsub.s32 0, %v995
        %v997 = vrot.slane %v992, %v996
        %v998 = vlaneseq
        %v999 = vshrl.u32 %v998, 7
        %v1000 = vsub.s32 1, %v999
        %v1001 = vrot.slane %v992, %v1000
        %v1004 = vadd.f32 %v986, %v997
        %v1005 = vadd.f32 %v987, %v1001
        %v1006 = vadd.f32 %v988, %v997
        %v1007 = vadd.f32 %v989, %v1001
        %v1008 = vadd.f32 %v990, %v997
        %v1009 = vadd.f32 %v991, %v1001
        %v1010 = vmax.f32 %v1004, 0.0
        %v1011 = vmax.f32 %v1005, 0.0
        %v1012 = vmax.f32 %v1006, 0.0
        %v1013 = vmax.f32 %v1007, 0.0
        %v1014 = vmax.f32 %v1008, 0.0
        %v1015 = vmax.f32 %v1009, 0.0
        %v1022 = vrot.slane %v1010, 1
        %v1023 = vrot.slane %v1012, 1
        %v1024 = vsel %vm439, %v1022, %v1023
        %v1025 = vrot.slane %v1011, 1
        %v1026 = vrot.slane %v1013, 1
        %v1027 = vsel %vm439, %v1025, %v1026
        %v1028 = vrot.slane %v1014, 1
        %v1029 = vsel %vm439, %v1023, %v1028
        %v1030 = vrot.slane %v1015, 1
        %v1031 = vsel %vm439, %v1026, %v1030
        %v1038 = vmax.f32 %v1010, %v1024
        %v1039 = vmax.f32 %v1011, %v1027
        %v1040 = vmax.f32 %v1012, %v1029
        %v1041 = vmax.f32 %v1013, %v1031
        %v1042 = vmax.f32 %v1014, %v1028
        %v1043 = vmax.f32 %v1015, %v1030
        %v1044 = vlaneseq
        %v1045 = vshrl.u32 %v1044, 7
        %v1046 = vadd.s32 %v1045, 8
        %v1047 = vlaneseq
        %v1048 = vand.u32 %v1047, 127
        %v1049 = vmul.u32 %v1045, 2
        %v1050 = vmul.u32 %v1046, 2
        %vm1051 = vcmp.eq.s32.totalorder %v1048, %v1049
        %vm1052 = vcmp.eq.s32.totalorder %v1048, %v1050
        %v1053 = vsel %vm1051, 1.0, 0.0
        %v1054 = vsel %vm1052, 1.0, 0.0
        %vm1055 = vcmask 187392
        %v1057 = vsel %vm1055, %v1053, 0
        %v1060 = vsel %vm1055, %v1054, 0
        %v1063 = vsel %vm439, %v1042, 0
        %v1066 = vsel %vm439, %v1043, 0
        %1068 = vmatprep.subr.mxu0 %v1039
        %1069 = vmatpush1.msra.mxu0 %v1038
        %1070 = vmatprep.subr.mxu0 %v1041
        %1071 = vmatpush1.msra.mxu0 %v1040
        %1072 = vmatprep.subr.mxu0 %v1066
        %1073 = vmatpush1.msra.mxu0 %v1063
        %1074 = vmatprep.subr.mxu0 0.0
        %1075 = vmatpush1.msra.mxu0 0.0
        %1076 = vmatprep.subr.mxu0 0.0
        %1077 = vmatpush1.msra.mxu0 0.0
        %1078 = vmatprep.subr.mxu0 0.0
        %1079 = vmatpush1.msra.mxu0 0.0
        %1080 = vmatprep.subr.mxu0 0.0
        %1081 = vmatpush1.msra.mxu0 0.0
        %1082 = vmatprep.subr.mxu0 0.0
        %1083 = vmatpush1.msra.mxu0 0.0
        %1084 = vmatprep.subr.mxu0 0.0
        %1085 = vmatpush1.msra.mxu0 0.0
        %1086 = vmatprep.subr.mxu0 0.0
        %1087 = vmatpush1.msra.mxu0 0.0
        %1088 = vmatprep.subr.mxu0 0.0
        %1089 = vmatpush1.msra.mxu0 0.0
        %1090 = vmatprep.subr.mxu0 0.0
        %1091 = vmatpush1.msra.mxu0 0.0
        %1092 = vmatprep.subr.mxu0 0.0
        %1093 = vmatpush1.msra.mxu0 0.0
        %1094 = vmatprep.subr.mxu0 0.0
        %1095 = vmatpush1.msra.mxu0 0.0
        %1096 = vmatprep.subr.mxu0 0.0
        %1097 = vmatpush1.msra.mxu0 0.0
        %1098 = vmatprep.subr.mxu0 0.0
        %1099 = vmatpush1.msra.mxu0 0.0
        %1100 = vmatprep.subr.mxu0 0.0
        %1101 = vmatpush1.msra.mxu0 0.0
        %1102 = vmatprep.subr.mxu0 0.0
        %1103 = vmatpush1.msra.mxu0 0.0
        %1104 = vmatprep.subr.mxu0 0.0
        %1105 = vmatpush1.msra.mxu0 0.0
        %1106 = vmatprep.subr.mxu0 0.0
        %1107 = vmatpush1.msra.mxu0 0.0
        %1108 = vmatprep.subr.mxu0 0.0
        %1109 = vmatpush1.msra.mxu0 0.0
        %1110 = vmatprep.subr.mxu0 0.0
        %1111 = vmatpush1.msra.mxu0 0.0
        %1112 = vmatprep.subr.mxu0 0.0
        %1113 = vmatpush1.msra.mxu0 0.0
        %1114 = vmatprep.subr.mxu0 0.0
        %1115 = vmatpush1.msra.mxu0 0.0
        %1116 = vmatprep.subr.mxu0 0.0
        %1117 = vmatpush1.msra.mxu0 0.0
        %1118 = vmatprep.subr.mxu0 0.0
        %1119 = vmatpush1.msra.mxu0 0.0
        %1120 = vmatprep.subr.mxu0 0.0
        %1121 = vmatpush1.msra.mxu0 0.0
        %1122 = vmatprep.subr.mxu0 0.0
        %1123 = vmatpush1.msra.mxu0 0.0
        %1124 = vmatprep.subr.mxu0 0.0
        %1125 = vmatpush1.msra.mxu0 0.0
        %1126 = vmatprep.subr.mxu0 0.0
        %1127 = vmatpush1.msra.mxu0 0.0
        %1128 = vmatprep.subr.mxu0 0.0
        %1129 = vmatpush1.msra.mxu0 0.0
        %1130 = vmatprep.subr.mxu0 0.0
        %1131 = vmatpush1.msra.mxu0 0.0
        %1132 = vmatprep.mubr.f32.mxu0 0.0
        %1133 = vmatmul.mubr.f32.gmra.mrb[0].mxu0 %v1057
        %v1134 = vpop.f32.mrb[0].mxu0
        %v1135 = vadd.f32 0.0, %v1134
        %v1136 = vpop.f32.mrb[0].mxu0
        %v1137 = vadd.f32 0.0, %v1136
        %1138 = vmatprep.mubr.f32.mxu0 0.0
        %1139 = vmatmul.mubr.f32.gmra.mrb[0].mxu0 %v1060
        %v1140 = vpop.f32.mrb[0].mxu0
        %v1141 = vadd.f32 0.0, %v1140
        %v1142 = vpop.f32.mrb[0].mxu0
        %v1143 = vadd.f32 0.0, %v1142
        %1144 = vdwg.mxu0
        %1149 = vrot.lane.b32.xlu0 %v1135, 127
        %v1150 = vpop.permute.xlu0 %1149
        %1151 = vrot.lane.b32.xlu0 %v1137, 127
        %v1152 = vpop.permute.xlu0 %1151
        %1153 = vrot.lane.b32.xlu0 %v1141, 127
        %v1154 = vpop.permute.xlu0 %1153
        %1155 = vrot.lane.b32.xlu0 %v1143, 127
        %v1156 = vpop.permute.xlu0 %1155
        %vm1157 = vcmask 1039360
        %v1158 = vsel %vm1157, %v1150, %v1152
        %v1159 = vsel %vm1157, %v1154, %v1156
        %v1164 = vmax.f32 %v1135, %v1158
        %v1165 = vmax.f32 %v1137, %v1152
        %v1166 = vmax.f32 %v1141, %v1159
        %v1167 = vmax.f32 %v1143, %v1156
        %v1168 = vadd.s32 %v1045, 16
        %v1169 = vadd.s32 %v1045, 24
        %v1170 = vadd.s32 %v1045, 32
        %v1171 = vadd.s32 %v1045, 40
        %v1172 = vadd.s32 %v1045, 48
        %v1173 = vadd.s32 %v1045, 56
        %v1174 = vadd.s32 %v1045, 64
        %v1175 = vadd.s32 %v1045, 72
        %v1176 = vadd.s32 %v1045, 80
        %v1177 = vadd.s32 %v1045, 88
        %v1178 = vadd.s32 %v1045, 96
        %v1179 = vadd.s32 %v1045, 104
        %v1180 = vadd.s32 %v1045, 112
        %v1181 = vadd.s32 %v1045, 120
        %v1182 = vadd.s32 %v1045, 128
        %v1183 = vadd.s32 %v1045, 136
        %v1184 = vmul.u32 %v1048, 2
        %vm1185 = vcmp.eq.s32.totalorder %v1045, %v1184
        %vm1186 = vcmp.eq.s32.totalorder %v1046, %v1184
        %vm1187 = vcmp.eq.s32.totalorder %v1168, %v1184
        %vm1188 = vcmp.eq.s32.totalorder %v1169, %v1184
        %vm1189 = vcmp.eq.s32.totalorder %v1170, %v1184
        %vm1190 = vcmp.eq.s32.totalorder %v1171, %v1184
        %vm1191 = vcmp.eq.s32.totalorder %v1172, %v1184
        %vm1192 = vcmp.eq.s32.totalorder %v1173, %v1184
        %vm1193 = vcmp.eq.s32.totalorder %v1174, %v1184
        %vm1194 = vcmp.eq.s32.totalorder %v1175, %v1184
        %vm1195 = vcmp.eq.s32.totalorder %v1176, %v1184
        %vm1196 = vcmp.eq.s32.totalorder %v1177, %v1184
        %vm1197 = vcmp.eq.s32.totalorder %v1178, %v1184
        %vm1198 = vcmp.eq.s32.totalorder %v1179, %v1184
        %vm1199 = vcmp.eq.s32.totalorder %v1180, %v1184
        %vm1200 = vcmp.eq.s32.totalorder %v1181, %v1184
        %vm1201 = vcmp.eq.s32.totalorder %v1182, %v1184
        %vm1202 = vcmp.eq.s32.totalorder %v1183, %v1184
        %v1203 = vsel %vm1185, 1.0, 0.0
        %v1204 = vsel %vm1186, 1.0, 0.0
        %v1205 = vsel %vm1187, 1.0, 0.0
        %v1206 = vsel %vm1188, 1.0, 0.0
        %v1207 = vsel %vm1189, 1.0, 0.0
        %v1208 = vsel %vm1190, 1.0, 0.0
        %v1209 = vsel %vm1191, 1.0, 0.0
        %v1210 = vsel %vm1192, 1.0, 0.0
        %v1211 = vsel %vm1193, 1.0, 0.0
        %v1212 = vsel %vm1194, 1.0, 0.0
        %v1213 = vsel %vm1195, 1.0, 0.0
        %v1214 = vsel %vm1196, 1.0, 0.0
        %v1215 = vsel %vm1197, 1.0, 0.0
        %v1216 = vsel %vm1198, 1.0, 0.0
        %v1217 = vsel %vm1199, 1.0, 0.0
        %v1218 = vsel %vm1200, 1.0, 0.0
        %v1219 = vsel %vm1201, 1.0, 0.0
        %v1220 = vsel %vm1202, 1.0, 0.0
        %vm1221 = vcmask 121856
        %v1223 = vsel %vm1221, %v1165, 0
        %v1226 = vsel %vm1221, %v1167, 0
        %v1229 = vsel %vm439, %v1220, 0
        %1231 = vmatprep.subr.mxu0 0.0
        %1232 = vmatpush1.msra.mxu0 %v1203
        %1233 = vmatprep.subr.mxu0 0.0
        %1234 = vmatpush1.msra.mxu0 %v1204
        %1235 = vmatprep.subr.mxu0 0.0
        %1236 = vmatpush1.msra.mxu0 %v1205
        %1237 = vmatprep.subr.mxu0 0.0
        %1238 = vmatpush1.msra.mxu0 %v1206
        %1239 = vmatprep.subr.mxu0 0.0
        %1240 = vmatpush1.msra.mxu0 %v1207
        %1241 = vmatprep.subr.mxu0 0.0
        %1242 = vmatpush1.msra.mxu0 %v1208
        %1243 = vmatprep.subr.mxu0 0.0
        %1244 = vmatpush1.msra.mxu0 %v1209
        %1245 = vmatprep.subr.mxu0 0.0
        %1246 = vmatpush1.msra.mxu0 %v1210
        %1247 = vmatprep.subr.mxu0 0.0
        %1248 = vmatpush1.msra.mxu0 %v1211
        %1249 = vmatprep.subr.mxu0 0.0
        %1250 = vmatpush1.msra.mxu0 %v1212
        %1251 = vmatprep.subr.mxu0 0.0
        %1252 = vmatpush1.msra.mxu0 %v1213
        %1253 = vmatprep.subr.mxu0 0.0
        %1254 = vmatpush1.msra.mxu0 %v1214
        %1255 = vmatprep.subr.mxu0 0.0
        %1256 = vmatpush1.msra.mxu0 %v1215
        %1257 = vmatprep.subr.mxu0 0.0
        %1258 = vmatpush1.msra.mxu0 %v1216
        %1259 = vmatprep.subr.mxu0 0.0
        %1260 = vmatpush1.msra.mxu0 %v1217
        %1261 = vmatprep.subr.mxu0 0.0
        %1262 = vmatpush1.msra.mxu0 %v1218
        %1263 = vmatprep.subr.mxu0 0.0
        %1264 = vmatpush1.msra.mxu0 %v1219
        %1265 = vmatprep.subr.mxu0 0.0
        %1266 = vmatpush1.msra.mxu0 %v1229
        %1267 = vmatprep.subr.mxu0 0.0
        %1268 = vmatpush1.msra.mxu0 0.0
        %1269 = vmatprep.subr.mxu0 0.0
        %1270 = vmatpush1.msra.mxu0 0.0
        %1271 = vmatprep.subr.mxu0 0.0
        %1272 = vmatpush1.msra.mxu0 0.0
        %1273 = vmatprep.subr.mxu0 0.0
        %1274 = vmatpush1.msra.mxu0 0.0
        %1275 = vmatprep.subr.mxu0 0.0
        %1276 = vmatpush1.msra.mxu0 0.0
        %1277 = vmatprep.subr.mxu0 0.0
        %1278 = vmatpush1.msra.mxu0 0.0
        %1279 = vmatprep.subr.mxu0 0.0
        %1280 = vmatpush1.msra.mxu0 0.0
        %1281 = vmatprep.subr.mxu0 0.0
        %1282 = vmatpush1.msra.mxu0 0.0
        %1283 = vmatprep.subr.mxu0 0.0
        %1284 = vmatpush1.msra.mxu0 0.0
        %1285 = vmatprep.subr.mxu0 0.0
        %1286 = vmatpush1.msra.mxu0 0.0
        %1287 = vmatprep.subr.mxu0 0.0
        %1288 = vmatpush1.msra.mxu0 0.0
        %1289 = vmatprep.subr.mxu0 0.0
        %1290 = vmatpush1.msra.mxu0 0.0
        %1291 = vmatprep.subr.mxu0 0.0
        %1292 = vmatpush1.msra.mxu0 0.0
        %1293 = vmatprep.subr.mxu0 0.0
        %1294 = vmatpush1.msra.mxu0 0.0
        %1295 = vmatprep.mubr.f32.mxu0 %v1223
        %1296 = vmatmul.mubr.f32.gmra.mrb[0].mxu0 %v1164
        %v1297 = vpop.f32.mrb[0].mxu0
        %v1298 = vadd.f32 0.0, %v1297
        %v1299 = vpop.f32.mrb[0].mxu0
        %1300 = vmatprep.mubr.f32.mxu0 %v1226
        %1301 = vmatmul.mubr.f32.gmra.mrb[0].mxu0 %v1166
        %v1302 = vpop.f32.mrb[0].mxu0
        %v1303 = vadd.f32 0.0, %v1302
        %v1304 = vpop.f32.mrb[0].mxu0
        %1305 = vdwg.mxu0
        %v1306 = vld [vmem:[%s3] sm:$0xff]
        %v1307 = vld [vmem:[%s3 + $0x8] sm:$0xff]
        %v1308 = vld [vmem:[%s3 + $0x10] sm:$0xff]
        %v1309 = vld [vmem:[%s3 + $0x18] sm:$0xff]
        %v1310 = vld [vmem:[%s3 + $0x20] sm:$0xff]
        %v1311 = vld [vmem:[%s3 + $0x28] sm:$0xff]
        %v1312 = vld [vmem:[%s3 + $0x30] sm:$0xff]
        %v1313 = vld [vmem:[%s3 + $0x38] sm:$0xff]
        %v1314 = vld [vmem:[%s3 + $0x40] sm:$0xff]
        %s1315 = scalar_lea.vmem %s3, 72
        %v1316 = vld [vmem:[%s1315] sm:$0xff]
        %v1317 = vld [vmem:[%s1315 + $0x8] sm:$0xff]
        %v1318 = vld [vmem:[%s1315 + $0x10] sm:$0xff]
        %v1319 = vld [vmem:[%s1315 + $0x18] sm:$0xff]
        %v1320 = vld [vmem:[%s1315 + $0x20] sm:$0xff]
        %v1321 = vld [vmem:[%s1315 + $0x28] sm:$0xff]
        %v1322 = vld [vmem:[%s1315 + $0x30] sm:$0xff]
        %v1323 = vld [vmem:[%s1315 + $0x38] sm:$0xff]
        %v1324 = vld [vmem:[%s1315 + $0x40] sm:$0xff]
        %v1327 = vrot.slane %v1298, 1
        %v1328 = vrot.slane %v1303, 1
        %v1329 = vsel %vm439, %v1327, %v1328
        %vm1330 = vcmask 588800
        %v1331 = vsel %vm1330, %v1329, 0
        %1333 = vmatprep.subr.mxu0 0.0
        %1334 = vmatpush1.msra.mxu0 %v1316
        %1335 = vmatprep.subr.mxu0 0.0
        %1336 = vmatpush1.msra.mxu0 %v1317
        %1337 = vmatprep.subr.mxu0 0.0
        %1338 = vmatpush1.msra.mxu0 %v1318
        %1339 = vmatprep.subr.mxu0 0.0
        %1340 = vmatpush1.msra.mxu0 %v1319
        %1341 = vmatprep.subr.mxu0 0.0
        %1342 = vmatpush1.msra.mxu0 %v1320
        %1343 = vmatprep.subr.mxu0 0.0
        %1344 = vmatpush1.msra.mxu0 %v1321
        %1345 = vmatprep.subr.mxu0 0.0
        %1346 = vmatpush1.msra.mxu0 %v1322
        %1347 = vmatprep.subr.mxu0 0.0
        %1348 = vmatpush1.msra.mxu0 %v1323
        %1349 = vmatprep.subr.mxu0 0.0
        %1350 = vmatpush1.msra.mxu0 %v1324
        %1351 = vmatprep.subr.mxu0 0.0
        %1352 = vmatpush1.msra.mxu0 0.0
        %1353 = vmatprep.subr.mxu0 0.0
        %1354 = vmatpush1.msra.mxu0 0.0
        %1355 = vmatprep.subr.mxu0 0.0
        %1356 = vmatpush1.msra.mxu0 0.0
        %1357 = vmatprep.subr.mxu0 0.0
        %1358 = vmatpush1.msra.mxu0 0.0
        %1359 = vmatprep.subr.mxu0 0.0
        %1360 = vmatpush1.msra.mxu0 0.0
        %1361 = vmatprep.subr.mxu0 0.0
        %1362 = vmatpush1.msra.mxu0 0.0
        %1363 = vmatprep.subr.mxu0 0.0
        %1364 = vmatpush1.msra.mxu0 0.0
        %1365 = vmatprep.subr.mxu0 0.0
        %1366 = vmatpush1.msra.mxu0 0.0
        %1367 = vmatprep.subr.mxu0 0.0
        %1368 = vmatpush1.msra.mxu0 0.0
        %1369 = vmatprep.subr.mxu0 0.0
        %1370 = vmatpush1.msra.mxu0 0.0
        %1371 = vmatprep.subr.mxu0 0.0
        %1372 = vmatpush1.msra.mxu0 0.0
        %1373 = vmatprep.subr.mxu0 0.0
        %1374 = vmatpush1.msra.mxu0 0.0
        %1375 = vmatprep.subr.mxu0 0.0
        %1376 = vmatpush1.msra.mxu0 0.0
        %1377 = vmatprep.subr.mxu0 0.0
        %1378 = vmatpush1.msra.mxu0 0.0
        %1379 = vmatprep.subr.mxu0 0.0
        %1380 = vmatpush1.msra.mxu0 0.0
        %1381 = vmatprep.subr.mxu0 0.0
        %1382 = vmatpush1.msra.mxu0 0.0
        %1383 = vmatprep.subr.mxu0 0.0
        %1384 = vmatpush1.msra.mxu0 0.0
        %1385 = vmatprep.subr.mxu0 0.0
        %1386 = vmatpush1.msra.mxu0 0.0
        %1387 = vmatprep.subr.mxu0 0.0
        %1388 = vmatpush1.msra.mxu0 0.0
        %1389 = vmatprep.subr.mxu0 0.0
        %1390 = vmatpush1.msra.mxu0 0.0
        %1391 = vmatprep.subr.mxu0 0.0
        %1392 = vmatpush1.msra.mxu0 0.0
        %1393 = vmatprep.subr.mxu0 0.0
        %1394 = vmatpush1.msra.mxu0 0.0
        %1395 = vmatprep.subr.mxu0 0.0
        %1396 = vmatpush1.msra.mxu0 0.0
        %1397 = vmatprep.mubr.f32.mxu0 0.0
        %1398 = vmatmul.mubr.f32.gmra.mrb[0].mxu0 %v1331
        %v1399 = vpop.f32.mrb[0].mxu0
        %v1400 = vadd.f32 0.0, %v1399
        %v1401 = vpop.f32.mrb[0].mxu0
        %1402 = vdwg.mxu0
        %v1403 = vsel %vm1330, %v1298, 0
        %1405 = vmatprep.subr.mxu0 0.0
        %1406 = vmatpush1.msra.mxu0 %v1306
        %1407 = vmatprep.subr.mxu0 0.0
        %1408 = vmatpush1.msra.mxu0 %v1307
        %1409 = vmatprep.subr.mxu0 0.0
        %1410 = vmatpush1.msra.mxu0 %v1308
        %1411 = vmatprep.subr.mxu0 0.0
        %1412 = vmatpush1.msra.mxu0 %v1309
        %1413 = vmatprep.subr.mxu0 0.0
        %1414 = vmatpush1.msra.mxu0 %v1310
        %1415 = vmatprep.subr.mxu0 0.0
        %1416 = vmatpush1.msra.mxu0 %v1311
        %1417 = vmatprep.subr.mxu0 0.0
        %1418 = vmatpush1.msra.mxu0 %v1312
        %1419 = vmatprep.subr.mxu0 0.0
        %1420 = vmatpush1.msra.mxu0 %v1313
        %1421 = vmatprep.subr.mxu0 0.0
        %1422 = vmatpush1.msra.mxu0 %v1314
        %1423 = vmatprep.subr.mxu0 0.0
        %1424 = vmatpush1.msra.mxu0 0.0
        %1425 = vmatprep.subr.mxu0 0.0
        %1426 = vmatpush1.msra.mxu0 0.0
        %1427 = vmatprep.subr.mxu0 0.0
        %1428 = vmatpush1.msra.mxu0 0.0
        %1429 = vmatprep.subr.mxu0 0.0
        %1430 = vmatpush1.msra.mxu0 0.0
        %1431 = vmatprep.subr.mxu0 0.0
        %1432 = vmatpush1.msra.mxu0 0.0
        %1433 = vmatprep.subr.mxu0 0.0
        %1434 = vmatpush1.msra.mxu0 0.0
        %1435 = vmatprep.subr.mxu0 0.0
        %1436 = vmatpush1.msra.mxu0 0.0
        %1437 = vmatprep.subr.mxu0 0.0
        %1438 = vmatpush1.msra.mxu0 0.0
        %1439 = vmatprep.subr.mxu0 0.0
        %1440 = vmatpush1.msra.mxu0 0.0
        %1441 = vmatprep.subr.mxu0 0.0
        %1442 = vmatpush1.msra.mxu0 0.0
        %1443 = vmatprep.subr.mxu0 0.0
        %1444 = vmatpush1.msra.mxu0 0.0
        %1445 = vmatprep.subr.mxu0 0.0
        %1446 = vmatpush1.msra.mxu0 0.0
        %1447 = vmatprep.subr.mxu0 0.0
        %1448 = vmatpush1.msra.mxu0 0.0
        %1449 = vmatprep.subr.mxu0 0.0
        %1450 = vmatpush1.msra.mxu0 0.0
        %1451 = vmatprep.subr.mxu0 0.0
        %1452 = vmatpush1.msra.mxu0 0.0
        %1453 = vmatprep.subr.mxu0 0.0
        %1454 = vmatpush1.msra.mxu0 0.0
        %1455 = vmatprep.subr.mxu0 0.0
        %1456 = vmatpush1.msra.mxu0 0.0
        %1457 = vmatprep.subr.mxu0 0.0
        %1458 = vmatpush1.msra.mxu0 0.0
        %1459 = vmatprep.subr.mxu0 0.0
        %1460 = vmatpush1.msra.mxu0 0.0
        %1461 = vmatprep.subr.mxu0 0.0
        %1462 = vmatpush1.msra.mxu0 0.0
        %1463 = vmatprep.subr.mxu0 0.0
        %1464 = vmatpush1.msra.mxu0 0.0
        %1465 = vmatprep.subr.mxu0 0.0
        %1466 = vmatpush1.msra.mxu0 0.0
        %1467 = vmatprep.subr.mxu0 0.0
        %1468 = vmatpush1.msra.mxu0 0.0
        %1469 = vmatprep.mubr.f32.mxu0 0.0
        %1470 = vmatmul.mubr.f32.gmra.mrb[0].mxu0 %v1403
        %v1471 = vpop.f32.mrb[0].mxu0
        %v1472 = vadd.f32 %v1400, %v1471
        %v1473 = vpop.f32.mrb[0].mxu0
        %1474 = vdwg.mxu0
        %s1475 = scalar_lea.vmem %s3, 144
        %v1476 = vld [vmem:[%s1475] sm:$0xff]
        %v1477 = vld [vmem:[%s1475 + $0x8] sm:$0xff]
        %v1478 = vld [vmem:[%s1475 + $0x10] sm:$0xff]
        %v1479 = vld [vmem:[%s1475 + $0x18] sm:$0xff]
        %v1480 = vld [vmem:[%s1475 + $0x20] sm:$0xff]
        %v1481 = vld [vmem:[%s1475 + $0x28] sm:$0xff]
        %v1482 = vld [vmem:[%s1475 + $0x30] sm:$0xff]
        %v1483 = vld [vmem:[%s1475 + $0x38] sm:$0xff]
        %v1484 = vld [vmem:[%s1475 + $0x40] sm:$0xff]
        %v1485 = vrot.slane %v1298, 2
        %v1486 = vrot.slane %v1303, 2
        %v1487 = vsel %vm648, %v1485, %v1486
        %v1488 = vsel %vm1330, %v1487, 0
        %1490 = vmatprep.subr.mxu0 0.0
        %1491 = vmatpush1.msra.mxu0 %v1476
        %1492 = vmatprep.subr.mxu0 0.0
        %1493 = vmatpush1.msra.mxu0 %v1477
        %1494 = vmatprep.subr.mxu0 0.0
        %1495 = vmatpush1.msra.mxu0 %v1478
        %1496 = vmatprep.subr.mxu0 0.0
        %1497 = vmatpush1.msra.mxu0 %v1479
        %1498 = vmatprep.subr.mxu0 0.0
        %1499 = vmatpush1.msra.mxu0 %v1480
        %1500 = vmatprep.subr.mxu0 0.0
        %1501 = vmatpush1.msra.mxu0 %v1481
        %1502 = vmatprep.subr.mxu0 0.0
        %1503 = vmatpush1.msra.mxu0 %v1482
        %1504 = vmatprep.subr.mxu0 0.0
        %1505 = vmatpush1.msra.mxu0 %v1483
        %1506 = vmatprep.subr.mxu0 0.0
        %1507 = vmatpush1.msra.mxu0 %v1484
        %1508 = vmatprep.subr.mxu0 0.0
        %1509 = vmatpush1.msra.mxu0 0.0
        %1510 = vmatprep.subr.mxu0 0.0
        %1511 = vmatpush1.msra.mxu0 0.0
        %1512 = vmatprep.subr.mxu0 0.0
        %1513 = vmatpush1.msra.mxu0 0.0
        %1514 = vmatprep.subr.mxu0 0.0
        %1515 = vmatpush1.msra.mxu0 0.0
        %1516 = vmatprep.subr.mxu0 0.0
        %1517 = vmatpush1.msra.mxu0 0.0
        %1518 = vmatprep.subr.mxu0 0.0
        %1519 = vmatpush1.msra.mxu0 0.0
        %1520 = vmatprep.subr.mxu0 0.0
        %1521 = vmatpush1.msra.mxu0 0.0
        %1522 = vmatprep.subr.mxu0 0.0
        %1523 = vmatpush1.msra.mxu0 0.0
        %1524 = vmatprep.subr.mxu0 0.0
        %1525 = vmatpush1.msra.mxu0 0.0
        %1526 = vmatprep.subr.mxu0 0.0
        %1527 = vmatpush1.msra.mxu0 0.0
        %1528 = vmatprep.subr.mxu0 0.0
        %1529 = vmatpush1.msra.mxu0 0.0
        %1530 = vmatprep.subr.mxu0 0.0
        %1531 = vmatpush1.msra.mxu0 0.0
        %1532 = vmatprep.subr.mxu0 0.0
        %1533 = vmatpush1.msra.mxu0 0.0
        %1534 = vmatprep.subr.mxu0 0.0
        %1535 = vmatpush1.msra.mxu0 0.0
        %1536 = vmatprep.subr.mxu0 0.0
        %1537 = vmatpush1.msra.mxu0 0.0
        %1538 = vmatprep.subr.mxu0 0.0
        %1539 = vmatpush1.msra.mxu0 0.0
        %1540 = vmatprep.subr.mxu0 0.0
        %1541 = vmatpush1.msra.mxu0 0.0
        %1542 = vmatprep.subr.mxu0 0.0
        %1543 = vmatpush1.msra.mxu0 0.0
        %1544 = vmatprep.subr.mxu0 0.0
        %1545 = vmatpush1.msra.mxu0 0.0
        %1546 = vmatprep.subr.mxu0 0.0
        %1547 = vmatpush1.msra.mxu0 0.0
        %1548 = vmatprep.subr.mxu0 0.0
        %1549 = vmatpush1.msra.mxu0 0.0
        %1550 = vmatprep.subr.mxu0 0.0
        %1551 = vmatpush1.msra.mxu0 0.0
        %1552 = vmatprep.subr.mxu0 0.0
        %1553 = vmatpush1.msra.mxu0 0.0
        %1554 = vmatprep.mubr.f32.mxu0 0.0
        %1555 = vmatmul.mubr.f32.gmra.mrb[0].mxu0 %v1488
        %v1556 = vpop.f32.mrb[0].mxu0
        %v1557 = vadd.f32 0.0, %v1556
        %v1558 = vpop.f32.mrb[0].mxu0
        %1559 = vdwg.mxu0
        %v1560 = vadd.f32 %v1472, %v1557
        %s1561 = scalar_lea.vmem %s3, 216
        %v1562 = vld [vmem:[%s1561] sm:$0xff]
        %v1563 = vld [vmem:[%s1561 + $0x8] sm:$0xff]
        %v1564 = vld [vmem:[%s1561 + $0x10] sm:$0xff]
        %v1565 = vld [vmem:[%s1561 + $0x18] sm:$0xff]
        %v1566 = vld [vmem:[%s1561 + $0x20] sm:$0xff]
        %v1567 = vld [vmem:[%s1561 + $0x28] sm:$0xff]
        %v1568 = vld [vmem:[%s1561 + $0x30] sm:$0xff]
        %v1569 = vld [vmem:[%s1561 + $0x38] sm:$0xff]
        %v1570 = vld [vmem:[%s1561 + $0x40] sm:$0xff]
        %v1571 = vrot.slane %v1298, 3
        %v1572 = vrot.slane %v1303, 3
        %v1573 = vsel %vm766, %v1571, %v1572
        %v1574 = vsel %vm1330, %v1573, 0
        %1576 = vmatprep.subr.mxu0 0.0
        %1577 = vmatpush1.msra.mxu0 %v1562
        %1578 = vmatprep.subr.mxu0 0.0
        %1579 = vmatpush1.msra.mxu0 %v1563
        %1580 = vmatprep.subr.mxu0 0.0
        %1581 = vmatpush1.msra.mxu0 %v1564
        %1582 = vmatprep.subr.mxu0 0.0
        %1583 = vmatpush1.msra.mxu0 %v1565
        %1584 = vmatprep.subr.mxu0 0.0
        %1585 = vmatpush1.msra.mxu0 %v1566
        %1586 = vmatprep.subr.mxu0 0.0
        %1587 = vmatpush1.msra.mxu0 %v1567
        %1588 = vmatprep.subr.mxu0 0.0
        %1589 = vmatpush1.msra.mxu0 %v1568
        %1590 = vmatprep.subr.mxu0 0.0
        %1591 = vmatpush1.msra.mxu0 %v1569
        %1592 = vmatprep.subr.mxu0 0.0
        %1593 = vmatpush1.msra.mxu0 %v1570
        %1594 = vmatprep.subr.mxu0 0.0
        %1595 = vmatpush1.msra.mxu0 0.0
        %1596 = vmatprep.subr.mxu0 0.0
        %1597 = vmatpush1.msra.mxu0 0.0
        %1598 = vmatprep.subr.mxu0 0.0
        %1599 = vmatpush1.msra.mxu0 0.0
        %1600 = vmatprep.subr.mxu0 0.0
        %1601 = vmatpush1.msra.mxu0 0.0
        %1602 = vmatprep.subr.mxu0 0.0
        %1603 = vmatpush1.msra.mxu0 0.0
        %1604 = vmatprep.subr.mxu0 0.0
        %1605 = vmatpush1.msra.mxu0 0.0
        %1606 = vmatprep.subr.mxu0 0.0
        %1607 = vmatpush1.msra.mxu0 0.0
        %1608 = vmatprep.subr.mxu0 0.0
        %1609 = vmatpush1.msra.mxu0 0.0
        %1610 = vmatprep.subr.mxu0 0.0
        %1611 = vmatpush1.msra.mxu0 0.0
        %1612 = vmatprep.subr.mxu0 0.0
        %1613 = vmatpush1.msra.mxu0 0.0
        %1614 = vmatprep.subr.mxu0 0.0
        %1615 = vmatpush1.msra.mxu0 0.0
        %1616 = vmatprep.subr.mxu0 0.0
        %1617 = vmatpush1.msra.mxu0 0.0
        %1618 = vmatprep.subr.mxu0 0.0
        %1619 = vmatpush1.msra.mxu0 0.0
        %1620 = vmatprep.subr.mxu0 0.0
        %1621 = vmatpush1.msra.mxu0 0.0
        %1622 = vmatprep.subr.mxu0 0.0
        %1623 = vmatpush1.msra.mxu0 0.0
        %1624 = vmatprep.subr.mxu0 0.0
        %1625 = vmatpush1.msra.mxu0 0.0
        %1626 = vmatprep.subr.mxu0 0.0
        %1627 = vmatpush1.msra.mxu0 0.0
        %1628 = vmatprep.subr.mxu0 0.0
        %1629 = vmatpush1.msra.mxu0 0.0
        %1630 = vmatprep.subr.mxu0 0.0
        %1631 = vmatpush1.msra.mxu0 0.0
        %1632 = vmatprep.subr.mxu0 0.0
        %1633 = vmatpush1.msra.mxu0 0.0
        %1634 = vmatprep.subr.mxu0 0.0
        %1635 = vmatpush1.msra.mxu0 0.0
        %1636 = vmatprep.subr.mxu0 0.0
        %1637 = vmatpush1.msra.mxu0 0.0
        %1638 = vmatprep.subr.mxu0 0.0
        %1639 = vmatpush1.msra.mxu0 0.0
        %1640 = vmatprep.mubr.f32.mxu0 0.0
        %1641 = vmatmul.mubr.f32.gmra.mrb[0].mxu0 %v1574
        %v1642 = vpop.f32.mrb[0].mxu0
        %v1643 = vadd.f32 0.0, %v1642
        %v1644 = vpop.f32.mrb[0].mxu0
        %1645 = vdwg.mxu0
        %v1646 = vadd.f32 %v1560, %v1643
        %s1647 = scalar_lea.vmem %s3, 288
        %v1648 = vld [vmem:[%s1647] sm:$0xff]
        %v1649 = vld [vmem:[%s1647 + $0x8] sm:$0xff]
        %v1650 = vld [vmem:[%s1647 + $0x10] sm:$0xff]
        %v1651 = vld [vmem:[%s1647 + $0x18] sm:$0xff]
        %v1652 = vld [vmem:[%s1647 + $0x20] sm:$0xff]
        %v1653 = vld [vmem:[%s1647 + $0x28] sm:$0xff]
        %v1654 = vld [vmem:[%s1647 + $0x30] sm:$0xff]
        %v1655 = vld [vmem:[%s1647 + $0x38] sm:$0xff]
        %v1656 = vld [vmem:[%s1647 + $0x40] sm:$0xff]
        %v1657 = vrot.slane %v1298, 4
        %v1658 = vrot.slane %v1303, 4
        %v1659 = vsel %vm454, %v1657, %v1658
        %v1660 = vsel %vm1330, %v1659, 0
        %1662 = vmatprep.subr.mxu0 0.0
        %1663 = vmatpush1.msra.mxu0 %v1648
        %1664 = vmatprep.subr.mxu0 0.0
        %1665 = vmatpush1.msra.mxu0 %v1649
        %1666 = vmatprep.subr.mxu0 0.0
        %1667 = vmatpush1.msra.mxu0 %v1650
        %1668 = vmatprep.subr.mxu0 0.0
        %1669 = vmatpush1.msra.mxu0 %v1651
        %1670 = vmatprep.subr.mxu0 0.0
        %1671 = vmatpush1.msra.mxu0 %v1652
        %1672 = vmatprep.subr.mxu0 0.0
        %1673 = vmatpush1.msra.mxu0 %v1653
        %1674 = vmatprep.subr.mxu0 0.0
        %1675 = vmatpush1.msra.mxu0 %v1654
        %1676 = vmatprep.subr.mxu0 0.0
        %1677 = vmatpush1.msra.mxu0 %v1655
        %1678 = vmatprep.subr.mxu0 0.0
        %1679 = vmatpush1.msra.mxu0 %v1656
        %1680 = vmatprep.subr.mxu0 0.0
        %1681 = vmatpush1.msra.mxu0 0.0
        %1682 = vmatprep.subr.mxu0 0.0
        %1683 = vmatpush1.msra.mxu0 0.0
        %1684 = vmatprep.subr.mxu0 0.0
        %1685 = vmatpush1.msra.mxu0 0.0
        %1686 = vmatprep.subr.mxu0 0.0
        %1687 = vmatpush1.msra.mxu0 0.0
        %1688 = vmatprep.subr.mxu0 0.0
        %1689 = vmatpush1.msra.mxu0 0.0
        %1690 = vmatprep.subr.mxu0 0.0
        %1691 = vmatpush1.msra.mxu0 0.0
        %1692 = vmatprep.subr.mxu0 0.0
        %1693 = vmatpush1.msra.mxu0 0.0
        %1694 = vmatprep.subr.mxu0 0.0
        %1695 = vmatpush1.msra.mxu0 0.0
        %1696 = vmatprep.subr.mxu0 0.0
        %1697 = vmatpush1.msra.mxu0 0.0
        %1698 = vmatprep.subr.mxu0 0.0
        %1699 = vmatpush1.msra.mxu0 0.0
        %1700 = vmatprep.subr.mxu0 0.0
        %1701 = vmatpush1.msra.mxu0 0.0
        %1702 = vmatprep.subr.mxu0 0.0
        %1703 = vmatpush1.msra.mxu0 0.0
        %1704 = vmatprep.subr.mxu0 0.0
        %1705 = vmatpush1.msra.mxu0 0.0
        %1706 = vmatprep.subr.mxu0 0.0
        %1707 = vmatpush1.msra.mxu0 0.0
        %1708 = vmatprep.subr.mxu0 0.0
        %1709 = vmatpush1.msra.mxu0 0.0
        %1710 = vmatprep.subr.mxu0 0.0
        %1711 = vmatpush1.msra.mxu0 0.0
        %1712 = vmatprep.subr.mxu0 0.0
        %1713 = vmatpush1.msra.mxu0 0.0
        %1714 = vmatprep.subr.mxu0 0.0
        %1715 = vmatpush1.msra.mxu0 0.0
        %1716 = vmatprep.subr.mxu0 0.0
        %1717 = vmatpush1.msra.mxu0 0.0
        %1718 = vmatprep.subr.mxu0 0.0
        %1719 = vmatpush1.msra.mxu0 0.0
        %1720 = vmatprep.subr.mxu0 0.0
        %1721 = vmatpush1.msra.mxu0 0.0
        %1722 = vmatprep.subr.mxu0 0.0
        %1723 = vmatpush1.msra.mxu0 0.0
        %1724 = vmatprep.subr.mxu0 0.0
        %1725 = vmatpush1.msra.mxu0 0.0
        %1726 = vmatprep.mubr.f32.mxu0 0.0
        %1727 = vmatmul.mubr.f32.gmra.mrb[0].mxu0 %v1660
        %v1728 = vpop.f32.mrb[0].mxu0
        %v1729 = vadd.f32 0.0, %v1728
        %v1730 = vpop.f32.mrb[0].mxu0
        %1731 = vdwg.mxu0
        %v1732 = vadd.f32 %v1646, %v1729
        %v1733 = vld [vmem:[%s4] sm:$0x1]
        %v1735 = vlaneseq
        %v1736 = vshrl.u32 %v1735, 7
        %v1737 = vsub.s32 0, %v1736
        %v1738 = vrot.slane %v1733, %v1737
        %v1740 = vadd.f32 %v1732, %v1738
        %v1741 = vmax.f32 %v1740, 0.0
        %v1743 = vrot.slane %v1741, 1
        %v1745 = vmax.f32 %v1741, %v1743
        %vm1746 = vcmask 56320
        %v1747 = vsel %vm1746, %v1053, 0
        %v1750 = vsel %vm439, %v1745, 0
        %1752 = vmatprep.subr.mxu0 0.0
        %1753 = vmatpush1.msra.mxu0 %v1750
        %1754 = vmatprep.subr.mxu0 0.0
        %1755 = vmatpush1.msra.mxu0 0.0
        %1756 = vmatprep.subr.mxu0 0.0
        %1757 = vmatpush1.msra.mxu0 0.0
        %1758 = vmatprep.subr.mxu0 0.0
        %1759 = vmatpush1.msra.mxu0 0.0
        %1760 = vmatprep.subr.mxu0 0.0
        %1761 = vmatpush1.msra.mxu0 0.0
        %1762 = vmatprep.subr.mxu0 0.0
        %1763 = vmatpush1.msra.mxu0 0.0
        %1764 = vmatprep.subr.mxu0 0.0
        %1765 = vmatpush1.msra.mxu0 0.0
        %1766 = vmatprep.subr.mxu0 0.0
        %1767 = vmatpush1.msra.mxu0 0.0
        %1768 = vmatprep.subr.mxu0 0.0
        %1769 = vmatpush1.msra.mxu0 0.0
        %1770 = vmatprep.subr.mxu0 0.0
        %1771 = vmatpush1.msra.mxu0 0.0
        %1772 = vmatprep.subr.mxu0 0.0
        %1773 = vmatpush1.msra.mxu0 0.0
        %1774 = vmatprep.subr.mxu0 0.0
        %1775 = vmatpush1.msra.mxu0 0.0
        %1776 = vmatprep.subr.mxu0 0.0
        %1777 = vmatpush1.msra.mxu0 0.0
        %1778 = vmatprep.subr.mxu0 0.0
        %1779 = vmatpush1.msra.mxu0 0.0
        %1780 = vmatprep.subr.mxu0 0.0
        %1781 = vmatpush1.msra.mxu0 0.0
        %1782 = vmatprep.subr.mxu0 0.0
        %1783 = vmatpush1.msra.mxu0 0.0
        %1784 = vmatprep.subr.mxu0 0.0
        %1785 = vmatpush1.msra.mxu0 0.0
        %1786 = vmatprep.subr.mxu0 0.0
        %1787 = vmatpush1.msra.mxu0 0.0
        %1788 = vmatprep.subr.mxu0 0.0
        %1789 = vmatpush1.msra.mxu0 0.0
        %1790 = vmatprep.subr.mxu0 0.0
        %1791 = vmatpush1.msra.mxu0 0.0
        %1792 = vmatprep.subr.mxu0 0.0
        %1793 = vmatpush1.msra.mxu0 0.0
        %1794 = vmatprep.subr.mxu0 0.0
        %1795 = vmatpush1.msra.mxu0 0.0
        %1796 = vmatprep.subr.mxu0 0.0
        %1797 = vmatpush1.msra.mxu0 0.0
        %1798 = vmatprep.subr.mxu0 0.0
        %1799 = vmatpush1.msra.mxu0 0.0
        %1800 = vmatprep.subr.mxu0 0.0
        %1801 = vmatpush1.msra.mxu0 0.0
        %1802 = vmatprep.subr.mxu0 0.0
        %1803 = vmatpush1.msra.mxu0 0.0
        %1804 = vmatprep.subr.mxu0 0.0
        %1805 = vmatpush1.msra.mxu0 0.0
        %1806 = vmatprep.subr.mxu0 0.0
        %1807 = vmatpush1.msra.mxu0 0.0
        %1808 = vmatprep.subr.mxu0 0.0
        %1809 = vmatpush1.msra.mxu0 0.0
        %1810 = vmatprep.subr.mxu0 0.0
        %1811 = vmatpush1.msra.mxu0 0.0
        %1812 = vmatprep.subr.mxu0 0.0
        %1813 = vmatpush1.msra.mxu0 0.0
        %1814 = vmatprep.subr.mxu0 0.0
        %1815 = vmatpush1.msra.mxu0 0.0
        %1816 = vmatprep.mubr.f32.mxu0 0.0
        %1817 = vmatmul.mubr.f32.gmra.mrb[0].mxu0 %v1747
        %v1818 = vpop.f32.mrb[0].mxu0
        %v1819 = vadd.f32 0.0, %v1818
        %v1820 = vpop.f32.mrb[0].mxu0
        %1821 = vdwg.mxu0
        %1823 = vrot.lane.b32.xlu0 %v1819, 127
        %v1824 = vpop.permute.xlu0 %1823
        %v1826 = vmax.f32 %v1819, %v1824
        %vm1827 = vcmask 777216
        %v1829 = vsel %vm1827, %v1826, 0
        %v1832 = vsel %vm439, %v1214, 0
        %1834 = vmatprep.subr.mxu0 0.0
        %1835 = vmatpush1.msra.mxu0 %v1203
        %1836 = vmatprep.subr.mxu0 0.0
        %1837 = vmatpush1.msra.mxu0 %v1204
        %1838 = vmatprep.subr.mxu0 0.0
        %1839 = vmatpush1.msra.mxu0 %v1205
        %1840 = vmatprep.subr.mxu0 0.0
        %1841 = vmatpush1.msra.mxu0 %v1206
        %1842 = vmatprep.subr.mxu0 0.0
        %1843 = vmatpush1.msra.mxu0 %v1207
        %1844 = vmatprep.subr.mxu0 0.0
        %1845 = vmatpush1.msra.mxu0 %v1208
        %1846 = vmatprep.subr.mxu0 0.0
        %1847 = vmatpush1.msra.mxu0 %v1209
        %1848 = vmatprep.subr.mxu0 0.0
        %1849 = vmatpush1.msra.mxu0 %v1210
        %1850 = vmatprep.subr.mxu0 0.0
        %1851 = vmatpush1.msra.mxu0 %v1211
        %1852 = vmatprep.subr.mxu0 0.0
        %1853 = vmatpush1.msra.mxu0 %v1212
        %1854 = vmatprep.subr.mxu0 0.0
        %1855 = vmatpush1.msra.mxu0 %v1213
        %1856 = vmatprep.subr.mxu0 0.0
        %1857 = vmatpush1.msra.mxu0 %v1832
        %1858 = vmatprep.subr.mxu0 0.0
        %1859 = vmatpush1.msra.mxu0 0.0
        %1860 = vmatprep.subr.mxu0 0.0
        %1861 = vmatpush1.msra.mxu0 0.0
        %1862 = vmatprep.subr.mxu0 0.0
        %1863 = vmatpush1.msra.mxu0 0.0
        %1864 = vmatprep.subr.mxu0 0.0
        %1865 = vmatpush1.msra.mxu0 0.0
        %1866 = vmatprep.subr.mxu0 0.0
        %1867 = vmatpush1.msra.mxu0 0.0
        %1868 = vmatprep.subr.mxu0 0.0
        %1869 = vmatpush1.msra.mxu0 0.0
        %1870 = vmatprep.subr.mxu0 0.0
        %1871 = vmatpush1.msra.mxu0 0.0
        %1872 = vmatprep.subr.mxu0 0.0
        %1873 = vmatpush1.msra.mxu0 0.0
        %1874 = vmatprep.subr.mxu0 0.0
        %1875 = vmatpush1.msra.mxu0 0.0
        %1876 = vmatprep.subr.mxu0 0.0
        %1877 = vmatpush1.msra.mxu0 0.0
        %1878 = vmatprep.subr.mxu0 0.0
        %1879 = vmatpush1.msra.mxu0 0.0
        %1880 = vmatprep.subr.mxu0 0.0
        %1881 = vmatpush1.msra.mxu0 0.0
        %1882 = vmatprep.subr.mxu0 0.0
        %1883 = vmatpush1.msra.mxu0 0.0
        %1884 = vmatprep.subr.mxu0 0.0
        %1885 = vmatpush1.msra.mxu0 0.0
        %1886 = vmatprep.subr.mxu0 0.0
        %1887 = vmatpush1.msra.mxu0 0.0
        %1888 = vmatprep.subr.mxu0 0.0
        %1889 = vmatpush1.msra.mxu0 0.0
        %1890 = vmatprep.subr.mxu0 0.0
        %1891 = vmatpush1.msra.mxu0 0.0
        %1892 = vmatprep.subr.mxu0 0.0
        %1893 = vmatpush1.msra.mxu0 0.0
        %1894 = vmatprep.subr.mxu0 0.0
        %1895 = vmatpush1.msra.mxu0 0.0
        %1896 = vmatprep.subr.mxu0 0.0
        %1897 = vmatpush1.msra.mxu0 0.0
        %1898 = vmatprep.mubr.f32.mxu0 0.0
        %1899 = vmatmul.mubr.f32.gmra.mrb[0].mxu0 %v1829
        %v1900 = vpop.f32.mrb[0].mxu0
        %v1901 = vadd.f32 0.0, %v1900
        %v1902 = vpop.f32.mrb[0].mxu0
        %1903 = vdwg.mxu0
        %v1904 = vld [vmem:[%s6] sm:$0x1]
        %v1905 = vld [vmem:[#allocation5] sm:$0xff]
        %v1906 = vld [vmem:[#allocation5 + $0x8] sm:$0xff]
        %v1907 = vld [vmem:[#allocation5 + $0x10] sm:$0xff]
        %v1908 = vld [vmem:[#allocation5 + $0x18] sm:$0xff]
        %v1909 = vld [vmem:[#allocation5 + $0x20] sm:$0xff]
        %v1910 = vld [vmem:[#allocation5 + $0x28] sm:$0xff]
        %vm1911 = vcmask 392192
        %v1913 = vsel %vm1911, %v1901, 0
        %1915 = vmatprep.subr.mxu0 0.0
        %1916 = vmatpush1.msra.mxu0 %v1905
        %1917 = vmatprep.subr.mxu0 0.0
        %1918 = vmatpush1.msra.mxu0 %v1906
        %1919 = vmatprep.subr.mxu0 0.0
        %1920 = vmatpush1.msra.mxu0 %v1907
        %1921 = vmatprep.subr.mxu0 0.0
        %1922 = vmatpush1.msra.mxu0 %v1908
        %1923 = vmatprep.subr.mxu0 0.0
        %1924 = vmatpush1.msra.mxu0 %v1909
        %1925 = vmatprep.subr.mxu0 0.0
        %1926 = vmatpush1.msra.mxu0 %v1910
        %1927 = vmatprep.subr.mxu0 0.0
        %1928 = vmatpush1.msra.mxu0 0.0
        %1929 = vmatprep.subr.mxu0 0.0
        %1930 = vmatpush1.msra.mxu0 0.0
        %1931 = vmatprep.subr.mxu0 0.0
        %1932 = vmatpush1.msra.mxu0 0.0
        %1933 = vmatprep.subr.mxu0 0.0
        %1934 = vmatpush1.msra.mxu0 0.0
        %1935 = vmatprep.subr.mxu0 0.0
        %1936 = vmatpush1.msra.mxu0 0.0
        %1937 = vmatprep.subr.mxu0 0.0
        %1938 = vmatpush1.msra.mxu0 0.0
        %1939 = vmatprep.subr.mxu0 0.0
        %1940 = vmatpush1.msra.mxu0 0.0
        %1941 = vmatprep.subr.mxu0 0.0
        %1942 = vmatpush1.msra.mxu0 0.0
        %1943 = vmatprep.subr.mxu0 0.0
        %1944 = vmatpush1.msra.mxu0 0.0
        %1945 = vmatprep.subr.mxu0 0.0
        %1946 = vmatpush1.msra.mxu0 0.0
        %1947 = vmatprep.subr.mxu0 0.0
        %1948 = vmatpush1.msra.mxu0 0.0
        %1949 = vmatprep.subr.mxu0 0.0
        %1950 = vmatpush1.msra.mxu0 0.0
        %1951 = vmatprep.subr.mxu0 0.0
        %1952 = vmatpush1.msra.mxu0 0.0
        %1953 = vmatprep.subr.mxu0 0.0
        %1954 = vmatpush1.msra.mxu0 0.0
        %1955 = vmatprep.subr.mxu0 0.0
        %1956 = vmatpush1.msra.mxu0 0.0
        %1957 = vmatprep.subr.mxu0 0.0
        %1958 = vmatpush1.msra.mxu0 0.0
        %1959 = vmatprep.subr.mxu0 0.0
        %1960 = vmatpush1.msra.mxu0 0.0
        %1961 = vmatprep.subr.mxu0 0.0
        %1962 = vmatpush1.msra.mxu0 0.0
        %1963 = vmatprep.subr.mxu0 0.0
        %1964 = vmatpush1.msra.mxu0 0.0
        %1965 = vmatprep.subr.mxu0 0.0
        %1966 = vmatpush1.msra.mxu0 0.0
        %1967 = vmatprep.subr.mxu0 0.0
        %1968 = vmatpush1.msra.mxu0 0.0
        %1969 = vmatprep.subr.mxu0 0.0
        %1970 = vmatpush1.msra.mxu0 0.0
        %1971 = vmatprep.subr.mxu0 0.0
        %1972 = vmatpush1.msra.mxu0 0.0
        %1973 = vmatprep.subr.mxu0 0.0
        %1974 = vmatpush1.msra.mxu0 0.0
        %1975 = vmatprep.subr.mxu0 0.0
        %1976 = vmatpush1.msra.mxu0 0.0
        %1977 = vmatprep.subr.mxu0 0.0
        %1978 = vmatpush1.msra.mxu0 0.0
        %1979 = vmatprep.mubr.f32.mxu0 0.0
        %1980 = vmatmul.mubr.f32.gmra.mrb[0].mxu0 %v1913
        %v1981 = vpop.f32.mrb[0].mxu0
        %v1982 = vadd.f32 0.0, %v1981
        %v1983 = vpop.f32.mrb[0].mxu0
        %1984 = vdwg.mxu0
        %v1985 = vadd.f32 %v1904, %v1982
        %s1986 = scalar_lea.vmem [#allocation5], 48
        %v1987 = vld [vmem:[%s1986] sm:$0xff]
        %v1988 = vld [vmem:[%s1986 + $0x8] sm:$0xff]
        %v1989 = vld [vmem:[%s1986 + $0x10] sm:$0xff]
        %v1990 = vld [vmem:[%s1986 + $0x18] sm:$0xff]
        %v1991 = vld [vmem:[%s1986 + $0x20] sm:$0xff]
        %v1992 = vld [vmem:[%s1986 + $0x28] sm:$0xff]
        %v1993 = vrot.slane %v1901, 1
        %v1994 = vsel %vm1911, %v1993, 0
        %1996 = vmatprep.subr.mxu0 0.0
        %1997 = vmatpush1.msra.mxu0 %v1987
        %1998 = vmatprep.subr.mxu0 0.0
        %1999 = vmatpush1.msra.mxu0 %v1988
        %2000 = vmatprep.subr.mxu0 0.0
        %2001 = vmatpush1.msra.mxu0 %v1989
        %2002 = vmatprep.subr.mxu0 0.0
        %2003 = vmatpush1.msra.mxu0 %v1990
        %2004 = vmatprep.subr.mxu0 0.0
        %2005 = vmatpush1.msra.mxu0 %v1991
        %2006 = vmatprep.subr.mxu0 0.0
        %2007 = vmatpush1.msra.mxu0 %v1992
        %2008 = vmatprep.subr.mxu0 0.0
        %2009 = vmatpush1.msra.mxu0 0.0
        %2010 = vmatprep.subr.mxu0 0.0
        %2011 = vmatpush1.msra.mxu0 0.0
        %2012 = vmatprep.subr.mxu0 0.0
        %2013 = vmatpush1.msra.mxu0 0.0
        %2014 = vmatprep.subr.mxu0 0.0
        %2015 = vmatpush1.msra.mxu0 0.0
        %2016 = vmatprep.subr.mxu0 0.0
        %2017 = vmatpush1.msra.mxu0 0.0
        %2018 = vmatprep.subr.mxu0 0.0
        %2019 = vmatpush1.msra.mxu0 0.0
        %2020 = vmatprep.subr.mxu0 0.0
        %2021 = vmatpush1.msra.mxu0 0.0
        %2022 = vmatprep.subr.mxu0 0.0
        %2023 = vmatpush1.msra.mxu0 0.0
        %2024 = vmatprep.subr.mxu0 0.0
        %2025 = vmatpush1.msra.mxu0 0.0
        %2026 = vmatprep.subr.mxu0 0.0
        %2027 = vmatpush1.msra.mxu0 0.0
        %2028 = vmatprep.subr.mxu0 0.0
        %2029 = vmatpush1.msra.mxu0 0.0
        %2030 = vmatprep.subr.mxu0 0.0
        %2031 = vmatpush1.msra.mxu0 0.0
        %2032 = vmatprep.subr.mxu0 0.0
        %2033 = vmatpush1.msra.mxu0 0.0
        %2034 = vmatprep.subr.mxu0 0.0
        %2035 = vmatpush1.msra.mxu0 0.0
        %2036 = vmatprep.subr.mxu0 0.0
        %2037 = vmatpush1.msra.mxu0 0.0
        %2038 = vmatprep.subr.mxu0 0.0
        %2039 = vmatpush1.msra.mxu0 0.0
        %2040 = vmatprep.subr.mxu0 0.0
        %2041 = vmatpush1.msra.mxu0 0.0
        %2042 = vmatprep.subr.mxu0 0.0
        %2043 = vmatpush1.msra.mxu0 0.0
        %2044 = vmatprep.subr.mxu0 0.0
        %2045 = vmatpush1.msra.mxu0 0.0
        %2046 = vmatprep.subr.mxu0 0.0
        %2047 = vmatpush1.msra.mxu0 0.0
        %2048 = vmatprep.subr.mxu0 0.0
        %2049 = vmatpush1.msra.mxu0 0.0
        %2050 = vmatprep.subr.mxu0 0.0
        %2051 = vmatpush1.msra.mxu0 0.0
        %2052 = vmatprep.subr.mxu0 0.0
        %2053 = vmatpush1.msra.mxu0 0.0
        %2054 = vmatprep.subr.mxu0 0.0
        %2055 = vmatpush1.msra.mxu0 0.0
        %2056 = vmatprep.subr.mxu0 0.0
        %2057 = vmatpush1.msra.mxu0 0.0
        %2058 = vmatprep.subr.mxu0 0.0
        %2059 = vmatpush1.msra.mxu0 0.0
        %2060 = vmatprep.mubr.f32.mxu0 0.0
        %2061 = vmatmul.mubr.f32.gmra.mrb[0].mxu0 %v1994
        %v2062 = vpop.f32.mrb[0].mxu0
        %v2063 = vadd.f32 0.0, %v2062
        %v2064 = vpop.f32.mrb[0].mxu0
        %2065 = vdwg.mxu0
        %v2066 = vadd.f32 %v1985, %v2063
        %s2067 = scalar_lea.vmem [#allocation5], 96
        %v2068 = vld [vmem:[%s2067] sm:$0xff]
        %v2069 = vld [vmem:[%s2067 + $0x8] sm:$0xff]
        %v2070 = vld [vmem:[%s2067 + $0x10] sm:$0xff]
        %v2071 = vld [vmem:[%s2067 + $0x18] sm:$0xff]
        %v2072 = vld [vmem:[%s2067 + $0x20] sm:$0xff]
        %v2073 = vld [vmem:[%s2067 + $0x28] sm:$0xff]
        %v2074 = vrot.slane %v1901, 2
        %v2075 = vsel %vm1911, %v2074, 0
        %2077 = vmatprep.subr.mxu0 0.0
        %2078 = vmatpush1.msra.mxu0 %v2068
        %2079 = vmatprep.subr.mxu0 0.0
        %2080 = vmatpush1.msra.mxu0 %v2069
        %2081 = vmatprep.subr.mxu0 0.0
        %2082 = vmatpush1.msra.mxu0 %v2070
        %2083 = vmatprep.subr.mxu0 0.0
        %2084 = vmatpush1.msra.mxu0 %v2071
        %2085 = vmatprep.subr.mxu0 0.0
        %2086 = vmatpush1.msra.mxu0 %v2072
        %2087 = vmatprep.subr.mxu0 0.0
        %2088 = vmatpush1.msra.mxu0 %v2073
        %2089 = vmatprep.subr.mxu0 0.0
        %2090 = vmatpush1.msra.mxu0 0.0
        %2091 = vmatprep.subr.mxu0 0.0
        %2092 = vmatpush1.msra.mxu0 0.0
        %2093 = vmatprep.subr.mxu0 0.0
        %2094 = vmatpush1.msra.mxu0 0.0
        %2095 = vmatprep.subr.mxu0 0.0
        %2096 = vmatpush1.msra.mxu0 0.0
        %2097 = vmatprep.subr.mxu0 0.0
        %2098 = vmatpush1.msra.mxu0 0.0
        %2099 = vmatprep.subr.mxu0 0.0
        %2100 = vmatpush1.msra.mxu0 0.0
        %2101 = vmatprep.subr.mxu0 0.0
        %2102 = vmatpush1.msra.mxu0 0.0
        %2103 = vmatprep.subr.mxu0 0.0
        %2104 = vmatpush1.msra.mxu0 0.0
        %2105 = vmatprep.subr.mxu0 0.0
        %2106 = vmatpush1.msra.mxu0 0.0
        %2107 = vmatprep.subr.mxu0 0.0
        %2108 = vmatpush1.msra.mxu0 0.0
        %2109 = vmatprep.subr.mxu0 0.0
        %2110 = vmatpush1.msra.mxu0 0.0
        %2111 = vmatprep.subr.mxu0 0.0
        %2112 = vmatpush1.msra.mxu0 0.0
        %2113 = vmatprep.subr.mxu0 0.0
        %2114 = vmatpush1.msra.mxu0 0.0
        %2115 = vmatprep.subr.mxu0 0.0
        %2116 = vmatpush1.msra.mxu0 0.0
        %2117 = vmatprep.subr.mxu0 0.0
        %2118 = vmatpush1.msra.mxu0 0.0
        %2119 = vmatprep.subr.mxu0 0.0
        %2120 = vmatpush1.msra.mxu0 0.0
        %2121 = vmatprep.subr.mxu0 0.0
        %2122 = vmatpush1.msra.mxu0 0.0
        %2123 = vmatprep.subr.mxu0 0.0
        %2124 = vmatpush1.msra.mxu0 0.0
        %2125 = vmatprep.subr.mxu0 0.0
        %2126 = vmatpush1.msra.mxu0 0.0
        %2127 = vmatprep.subr.mxu0 0.0
        %2128 = vmatpush1.msra.mxu0 0.0
        %2129 = vmatprep.subr.mxu0 0.0
        %2130 = vmatpush1.msra.mxu0 0.0
        %2131 = vmatprep.subr.mxu0 0.0
        %2132 = vmatpush1.msra.mxu0 0.0
        %2133 = vmatprep.subr.mxu0 0.0
        %2134 = vmatpush1.msra.mxu0 0.0
        %2135 = vmatprep.subr.mxu0 0.0
        %2136 = vmatpush1.msra.mxu0 0.0
        %2137 = vmatprep.subr.mxu0 0.0
        %2138 = vmatpush1.msra.mxu0 0.0
        %2139 = vmatprep.subr.mxu0 0.0
        %2140 = vmatpush1.msra.mxu0 0.0
        %2141 = vmatprep.mubr.f32.mxu0 0.0
        %2142 = vmatmul.mubr.f32.gmra.mrb[0].mxu0 %v2075
        %v2143 = vpop.f32.mrb[0].mxu0
        %v2144 = vadd.f32 0.0, %v2143
        %v2145 = vpop.f32.mrb[0].mxu0
        %2146 = vdwg.mxu0
        %v2147 = vadd.f32 %v2066, %v2144
        %s2148 = scalar_lea.vmem [#allocation5], 144
        %v2149 = vld [vmem:[%s2148] sm:$0xff]
        %v2150 = vld [vmem:[%s2148 + $0x8] sm:$0xff]
        %v2151 = vld [vmem:[%s2148 + $0x10] sm:$0xff]
        %v2152 = vld [vmem:[%s2148 + $0x18] sm:$0xff]
        %v2153 = vld [vmem:[%s2148 + $0x20] sm:$0xff]
        %v2154 = vld [vmem:[%s2148 + $0x28] sm:$0xff]
        %v2155 = vrot.slane %v1901, 3
        %v2156 = vsel %vm1911, %v2155, 0
        %2158 = vmatprep.subr.mxu0 0.0
        %2159 = vmatpush1.msra.mxu0 %v2149
        %2160 = vmatprep.subr.mxu0 0.0
        %2161 = vmatpush1.msra.mxu0 %v2150
        %2162 = vmatprep.subr.mxu0 0.0
        %2163 = vmatpush1.msra.mxu0 %v2151
        %2164 = vmatprep.subr.mxu0 0.0
        %2165 = vmatpush1.msra.mxu0 %v2152
        %2166 = vmatprep.subr.mxu0 0.0
        %2167 = vmatpush1.msra.mxu0 %v2153
        %2168 = vmatprep.subr.mxu0 0.0
        %2169 = vmatpush1.msra.mxu0 %v2154
        %2170 = vmatprep.subr.mxu0 0.0
        %2171 = vmatpush1.msra.mxu0 0.0
        %2172 = vmatprep.subr.mxu0 0.0
        %2173 = vmatpush1.msra.mxu0 0.0
        %2174 = vmatprep.subr.mxu0 0.0
        %2175 = vmatpush1.msra.mxu0 0.0
        %2176 = vmatprep.subr.mxu0 0.0
        %2177 = vmatpush1.msra.mxu0 0.0
        %2178 = vmatprep.subr.mxu0 0.0
        %2179 = vmatpush1.msra.mxu0 0.0
        %2180 = vmatprep.subr.mxu0 0.0
        %2181 = vmatpush1.msra.mxu0 0.0
        %2182 = vmatprep.subr.mxu0 0.0
        %2183 = vmatpush1.msra.mxu0 0.0
        %2184 = vmatprep.subr.mxu0 0.0
        %2185 = vmatpush1.msra.mxu0 0.0
        %2186 = vmatprep.subr.mxu0 0.0
        %2187 = vmatpush1.msra.mxu0 0.0
        %2188 = vmatprep.subr.mxu0 0.0
        %2189 = vmatpush1.msra.mxu0 0.0
        %2190 = vmatprep.subr.mxu0 0.0
        %2191 = vmatpush1.msra.mxu0 0.0
        %2192 = vmatprep.subr.mxu0 0.0
        %2193 = vmatpush1.msra.mxu0 0.0
        %2194 = vmatprep.subr.mxu0 0.0
        %2195 = vmatpush1.msra.mxu0 0.0
        %2196 = vmatprep.subr.mxu0 0.0
        %2197 = vmatpush1.msra.mxu0 0.0
        %2198 = vmatprep.subr.mxu0 0.0
        %2199 = vmatpush1.msra.mxu0 0.0
        %2200 = vmatprep.subr.mxu0 0.0
        %2201 = vmatpush1.msra.mxu0 0.0
        %2202 = vmatprep.subr.mxu0 0.0
        %2203 = vmatpush1.msra.mxu0 0.0
        %2204 = vmatprep.subr.mxu0 0.0
        %2205 = vmatpush1.msra.mxu0 0.0
        %2206 = vmatprep.subr.mxu0 0.0
        %2207 = vmatpush1.msra.mxu0 0.0
        %2208 = vmatprep.subr.mxu0 0.0
        %2209 = vmatpush1.msra.mxu0 0.0
        %2210 = vmatprep.subr.mxu0 0.0
        %2211 = vmatpush1.msra.mxu0 0.0
        %2212 = vmatprep.subr.mxu0 0.0
        %2213 = vmatpush1.msra.mxu0 0.0
        %2214 = vmatprep.subr.mxu0 0.0
        %2215 = vmatpush1.msra.mxu0 0.0
        %2216 = vmatprep.subr.mxu0 0.0
        %2217 = vmatpush1.msra.mxu0 0.0
        %2218 = vmatprep.subr.mxu0 0.0
        %2219 = vmatpush1.msra.mxu0 0.0
        %2220 = vmatprep.subr.mxu0 0.0
        %2221 = vmatpush1.msra.mxu0 0.0
        %2222 = vmatprep.mubr.f32.mxu0 0.0
        %2223 = vmatmul.mubr.f32.gmra.mrb[0].mxu0 %v2156
        %v2224 = vpop.f32.mrb[0].mxu0
        %v2225 = vadd.f32 0.0, %v2224
        %v2226 = vpop.f32.mrb[0].mxu0
        %2227 = vdwg.mxu0
        %v2228 = vadd.f32 %v2147, %v2225
        %v2229 = vmax.f32 %v2228, 0.0
        %v2230 = vld [vmem:[%s7] sm:$0xff]
        %v2231 = vld [vmem:[%s7 + $0x8] sm:$0xff]
        %v2232 = vld [vmem:[%s7 + $0x10] sm:$0xff]
        %v2233 = vld [vmem:[%s7 + $0x18] sm:$0xff]
        %v2234 = vld [vmem:[%s7 + $0x20] sm:$0xff]
        %v2235 = vld [vmem:[%s7 + $0x28] sm:$0xff]
        %v2236 = vld [vmem:[%s7 + $0x30] sm:$0xff]
        %v2237 = vld [vmem:[%s7 + $0x38] sm:$0xff]
        %v2238 = vld [vmem:[%s7 + $0x40] sm:$0xff]
        %v2239 = vld [vmem:[%s7 + $0x48] sm:$0xff]
        %v2240 = vld [vmem:[%s7 + $0x50] sm:$0xff]
        %v2241 = vld [vmem:[%s7 + $0x58] sm:$0xff]
        %v2242 = vld [vmem:[%s7 + $0x60] sm:$0xff]
        %v2243 = vld [vmem:[%s7 + $0x68] sm:$0xff]
        %v2244 = vld [vmem:[%s7 + $0x70] sm:$0xff]
        %v2245 = vld [vmem:[%s8] sm:$0x1]
        %vm2246 = vcmask 982016
        %v2248 = vsel %vm2246, %v2229, 0
        %2250 = vmatprep.subr.mxu0 0.0
        %2251 = vmatpush1.msra.mxu0 %v2230
        %2252 = vmatprep.subr.mxu0 0.0
        %2253 = vmatpush1.msra.mxu0 %v2231
        %2254 = vmatprep.subr.mxu0 0.0
        %2255 = vmatpush1.msra.mxu0 %v2232
        %2256 = vmatprep.subr.mxu0 0.0
        %2257 = vmatpush1.msra.mxu0 %v2233
        %2258 = vmatprep.subr.mxu0 0.0
        %2259 = vmatpush1.msra.mxu0 %v2234
        %2260 = vmatprep.subr.mxu0 0.0
        %2261 = vmatpush1.msra.mxu0 %v2235
        %2262 = vmatprep.subr.mxu0 0.0
        %2263 = vmatpush1.msra.mxu0 %v2236
        %2264 = vmatprep.subr.mxu0 0.0
        %2265 = vmatpush1.msra.mxu0 %v2237
        %2266 = vmatprep.subr.mxu0 0.0
        %2267 = vmatpush1.msra.mxu0 %v2238
        %2268 = vmatprep.subr.mxu0 0.0
        %2269 = vmatpush1.msra.mxu0 %v2239
        %2270 = vmatprep.subr.mxu0 0.0
        %2271 = vmatpush1.msra.mxu0 %v2240
        %2272 = vmatprep.subr.mxu0 0.0
        %2273 = vmatpush1.msra.mxu0 %v2241
        %2274 = vmatprep.subr.mxu0 0.0
        %2275 = vmatpush1.msra.mxu0 %v2242
        %2276 = vmatprep.subr.mxu0 0.0
        %2277 = vmatpush1.msra.mxu0 %v2243
        %2278 = vmatprep.subr.mxu0 0.0
        %2279 = vmatpush1.msra.mxu0 %v2244
        %2280 = vmatprep.subr.mxu0 0.0
        %2281 = vmatpush1.msra.mxu0 0.0
        %2282 = vmatprep.subr.mxu0 0.0
        %2283 = vmatpush1.msra.mxu0 0.0
        %2284 = vmatprep.subr.mxu0 0.0
        %2285 = vmatpush1.msra.mxu0 0.0
        %2286 = vmatprep.subr.mxu0 0.0
        %2287 = vmatpush1.msra.mxu0 0.0
        %2288 = vmatprep.subr.mxu0 0.0
        %2289 = vmatpush1.msra.mxu0 0.0
        %2290 = vmatprep.subr.mxu0 0.0
        %2291 = vmatpush1.msra.mxu0 0.0
        %2292 = vmatprep.subr.mxu0 0.0
        %2293 = vmatpush1.msra.mxu0 0.0
        %2294 = vmatprep.subr.mxu0 0.0
        %2295 = vmatpush1.msra.mxu0 0.0
        %2296 = vmatprep.subr.mxu0 0.0
        %2297 = vmatpush1.msra.mxu0 0.0
        %2298 = vmatprep.subr.mxu0 0.0
        %2299 = vmatpush1.msra.mxu0 0.0
        %2300 = vmatprep.subr.mxu0 0.0
        %2301 = vmatpush1.msra.mxu0 0.0
        %2302 = vmatprep.subr.mxu0 0.0
        %2303 = vmatpush1.msra.mxu0 0.0
        %2304 = vmatprep.subr.mxu0 0.0
        %2305 = vmatpush1.msra.mxu0 0.0
        %2306 = vmatprep.subr.mxu0 0.0
        %2307 = vmatpush1.msra.mxu0 0.0
        %2308 = vmatprep.subr.mxu0 0.0
        %2309 = vmatpush1.msra.mxu0 0.0
        %2310 = vmatprep.subr.mxu0 0.0
        %2311 = vmatpush1.msra.mxu0 0.0
        %2312 = vmatprep.subr.mxu0 0.0
        %2313 = vmatpush1.msra.mxu0 0.0
        %2314 = vmatprep.mubr.f32.mxu0 0.0
        %2315 = vmatmul.mubr.f32.gmra.mrb[0].mxu0 %v2248
        %v2316 = vpop.f32.mrb[0].mxu0
        %v2317 = vadd.f32 %v2245, %v2316
        %v2318 = vpop.f32.mrb[0].mxu0
        %2319 = vdwg.mxu0
        %v2320 = vmax.f32 %v2317, 0.0
        %v2321 = vld [vmem:[%s9] sm:$0xff]
        %v2322 = vld [vmem:[%s9 + $0x8] sm:$0xff]
        %v2323 = vld [vmem:[%s9 + $0x10] sm:$0xff]
        %v2324 = vld [vmem:[%s9 + $0x18] sm:$0xff]
        %v2325 = vld [vmem:[%s9 + $0x20] sm:$0xff]
        %v2326 = vld [vmem:[%s9 + $0x28] sm:$0xff]
        %v2327 = vld [vmem:[%s9 + $0x30] sm:$0xff]
        %v2328 = vld [vmem:[%s9 + $0x38] sm:$0xf]
        %v2329 = vld [vmem:[%s10] sm:$0x1]
        %vm2330 = vcmask 490496
        %v2332 = vsel %vm2330, %v2320, 0
        %v2335 = vsel %vm454, %v2328, 0
        %2337 = vmatprep.subr.mxu0 0.0
        %2338 = vmatpush1.msra.mxu0 %v2321
        %2339 = vmatprep.subr.mxu0 0.0
        %2340 = vmatpush1.msra.mxu0 %v2322
        %2341 = vmatprep.subr.mxu0 0.0
        %2342 = vmatpush1.msra.mxu0 %v2323
        %2343 = vmatprep.subr.mxu0 0.0
        %2344 = vmatpush1.msra.mxu0 %v2324
        %2345 = vmatprep.subr.mxu0 0.0
        %2346 = vmatpush1.msra.mxu0 %v2325
        %2347 = vmatprep.subr.mxu0 0.0
        %2348 = vmatpush1.msra.mxu0 %v2326
        %2349 = vmatprep.subr.mxu0 0.0
        %2350 = vmatpush1.msra.mxu0 %v2327
        %2351 = vmatprep.subr.mxu0 0.0
        %2352 = vmatpush1.msra.mxu0 %v2335
        %2353 = vmatprep.subr.mxu0 0.0
        %2354 = vmatpush1.msra.mxu0 0.0
        %2355 = vmatprep.subr.mxu0 0.0
        %2356 = vmatpush1.msra.mxu0 0.0
        %2357 = vmatprep.subr.mxu0 0.0
        %2358 = vmatpush1.msra.mxu0 0.0
        %2359 = vmatprep.subr.mxu0 0.0
        %2360 = vmatpush1.msra.mxu0 0.0
        %2361 = vmatprep.subr.mxu0 0.0
        %2362 = vmatpush1.msra.mxu0 0.0
        %2363 = vmatprep.subr.mxu0 0.0
        %2364 = vmatpush1.msra.mxu0 0.0
        %2365 = vmatprep.subr.mxu0 0.0
        %2366 = vmatpush1.msra.mxu0 0.0
        %2367 = vmatprep.subr.mxu0 0.0
        %2368 = vmatpush1.msra.mxu0 0.0
        %2369 = vmatprep.subr.mxu0 0.0
        %2370 = vmatpush1.msra.mxu0 0.0
        %2371 = vmatprep.subr.mxu0 0.0
        %2372 = vmatpush1.msra.mxu0 0.0
        %2373 = vmatprep.subr.mxu0 0.0
        %2374 = vmatpush1.msra.mxu0 0.0
        %2375 = vmatprep.subr.mxu0 0.0
        %2376 = vmatpush1.msra.mxu0 0.0
        %2377 = vmatprep.subr.mxu0 0.0
        %2378 = vmatpush1.msra.mxu0 0.0
        %2379 = vmatprep.subr.mxu0 0.0
        %2380 = vmatpush1.msra.mxu0 0.0
        %2381 = vmatprep.subr.mxu0 0.0
        %2382 = vmatpush1.msra.mxu0 0.0
        %2383 = vmatprep.subr.mxu0 0.0
        %2384 = vmatpush1.msra.mxu0 0.0
        %2385 = vmatprep.subr.mxu0 0.0
        %2386 = vmatpush1.msra.mxu0 0.0
        %2387 = vmatprep.subr.mxu0 0.0
        %2388 = vmatpush1.msra.mxu0 0.0
        %2389 = vmatprep.subr.mxu0 0.0
        %2390 = vmatpush1.msra.mxu0 0.0
        %2391 = vmatprep.subr.mxu0 0.0
        %2392 = vmatpush1.msra.mxu0 0.0
        %2393 = vmatprep.subr.mxu0 0.0
        %2394 = vmatpush1.msra.mxu0 0.0
        %2395 = vmatprep.subr.mxu0 0.0
        %2396 = vmatpush1.msra.mxu0 0.0
        %2397 = vmatprep.subr.mxu0 0.0
        %2398 = vmatpush1.msra.mxu0 0.0
        %2399 = vmatprep.subr.mxu0 0.0
        %2400 = vmatpush1.msra.mxu0 0.0
        %2401 = vmatprep.mubr.f32.mxu0 0.0
        %2402 = vmatmul.mubr.f32.gmra.mrb[0].mxu0 %v2332
        %v2403 = vpop.f32.mrb[0].mxu0
        %v2404 = vadd.f32 %v2329, %v2403
        %v2405 = vpop.f32.mrb[0].mxu0
        %2406 = vdwg.mxu0
        %vm2407 = vcmask 73728
        %2408 = vst.msk [vmem:[%s408] sm:$0x1] %vm2407, %v2404
        %s2409 = sand.u32 %s271, 1
        %s2410 = scalar_lea.sflag [#allocation4], %s2409
        %s2411 = sand.u32 %s271, 1
        %s2412 = scalar_lea.vmem [#allocation7], %s2411
        // Predicated region
        $region73: #{network_forward.1} parent=63 // pred_check
          %p2413 = pneg %p281
        $region74: #{network_forward.1} parent=63 // pred_check_branch
          %2415 = sbr.rel (%p2413) target = $region76
        $region75: #{network_forward.1} parent=63 // pred_region
          %s2417 = ssub.s32 16, 16
          %2418 = vsyncadd %s2410, %s2417
          %s2419 = smul.addr %s27, 16
          %s2420 = scalar_lea.hbm %s11, %s2419
          %s2422 = sshll.u32 %s2412, 4
          %s2423 = int_to_ptr.vmem [resolvable:$true] %s2422
          %2425 = dma.vmem_to_hbm [thread:$0]  %s2423, 16, %s2420, %s2410
        $region76: #{network_forward.1} parent=63 // pred_fallthru
          _
      $region64: #{network_forward.1} parent=5 // pred_fallthru
        _
      %p2426 = scmp.le.s32.totalorder 2, %s22
      // Predicated region
      $region77: #{network_forward.1} parent=5 // pred_check
        %p2427 = pneg %p2426
      $region78: #{network_forward.1} parent=5 // pred_check_branch
        %2429 = sbr.rel (%p2427) target = $region80
      $region79: #{network_forward.1} parent=5 // pred_region
        %s2430 = ssub.s32 %s22, 2
        // Predicated region
        $region81: #{network_forward.1} parent=79 // pred_check
          %p2431 = pneg %p287
        $region82: #{network_forward.1} parent=79 // pred_check_branch
          %2433 = sbr.rel (%p2431) target = $region84
        $region83: #{network_forward.1} parent=79 // pred_region
          %s2434 = sand.u32 %s272, 1
          %s2435 = scalar_lea.sflag [#allocation4], %s2434
          %s2436 = sand.u32 %s272, 1
          %s2437 = scalar_lea.vmem [#allocation7], %s2436
          %2438 = dma.done %s2435, 16
        $region84: #{network_forward.1} parent=79 // pred_fallthru
          _
      $region80: #{network_forward.1} parent=5 // pred_fallthru
        _
    $region6: #{network_forward.1} parent=1 // loop_footer
      %s26 = sadd.s32 1, %s22
    $region7: #{network_forward.1} parent=1 // loop_footer_branch
      %21 = sbr.rel target = $region3
    $region8: #{network_forward.1} parent=1 // loop_exit
      _
    %2439 = vsyncpa [#allocation3], 1
    %s2440 = scalar_lea.sflag [#allocation3], 1
    %2441 = vsyncpa %s2440, 1
    %2442 = vsyncpa [#allocation6], 1
    %2443 = vsyncpa [#allocation4], 1
    %s2444 = scalar_lea.sflag [#allocation4], 1
    %2445 = vsyncpa %s2444, 1

</llo_original>
